<compile_context>
chip_gen: v7x
topology: tpu7x:2x2x1
jax: 0.10.0
libtpu: 0.0.40
codegen_flags: <defaults>
</compile_context>

<pallas_src>
import functools

import jax
import jax.numpy as jnp
from jax.experimental import pallas as pl
from jax.experimental.pallas import tpu as pltpu


# ----------------------------- Pallas kernel --------------------------------
def _vq_kernel(labels_ref,                      # scalar prefetch (SMEM), unused in body
               x_ref,                           # (1, E, tT)  raw channel-major features
               cb_ref,                          # (1, K, D)   class codebook (selected by label)
               cbsq_ref,                        # (1, K, 1)   ||cb_k||^2
               cbw3_ref,                        # (1, E, K)   W3 @ cb^T  (project_out[0] folded)
               w1_ref, b1_ref,                  # (E, E), (E, 1)   project_in[0]
               w2_ref, b2_ref,                  # (D, E), (D, 1)   project_in[2]
               gin_ref, bin_ref,                # (D, 1), (D, 1)   norm_in
               b3_ref,                          # (E, 1)           project_out[0] bias
               w4_ref, b4_ref,                  # (E, E), (E, 1)   project_out[2]
               gout_ref, bout_ref,              # (E, 1), (E, 1)   norm_out
               q_ref,                           # out (1, E, tT)
               idx_ref):                        # out (1, 1, tT) int32
    x = x_ref[0].astype(jnp.float32)            # (E, tT), tokens on lanes

    # --- project_in: Linear(E,E) -> ReLU -> Linear(E,D), W @ X form ---
    h = jnp.dot(w1_ref[...], x, preferred_element_type=jnp.float32) + b1_ref[...]
    h = jnp.maximum(h, 0.0)
    f = jnp.dot(w2_ref[...], h, preferred_element_type=jnp.float32) + b2_ref[...]   # (D, tT)

    # --- norm_in: LayerNorm over codebook_dim D (sublane axis), eps=1e-5 ---
    mu = jnp.mean(f, axis=0, keepdims=True)
    var = jnp.mean((f - mu) ** 2, axis=0, keepdims=True)
    f = (f - mu) * jax.lax.rsqrt(var + 1e-5) * gin_ref[...] + bin_ref[...]           # (D, tT)

    # --- euclidean distances (up to a per-token constant) and first-argmin ---
    # d'[k, t] = ||cb_k||^2 - 2 * cb_k . f_t      (||f_t||^2 dropped: argmin-invariant)
    cb = cb_ref[0].astype(jnp.float32)                                               # (K, D)
    d = cbsq_ref[0] - 2.0 * jnp.dot(cb, f, preferred_element_type=jnp.float32)       # (K, tT)

    num_k = d.shape[0]
    min_d = jnp.min(d, axis=0, keepdims=True)                                        # (1, tT)
    iota = jax.lax.broadcasted_iota(jnp.int32, d.shape, 0)                           # (K, tT)
    idx2d = jnp.min(jnp.where(d <= min_d, iota, num_k), axis=0, keepdims=True)       # (1, tT)
    onehot = (iota == idx2d).astype(jnp.float32)                                     # (K, tT)

    # --- quantize + project_out[0] folded: h2 = W3 @ cb[idx] + b3 ---
    h2 = jnp.dot(cbw3_ref[0], onehot, preferred_element_type=jnp.float32) + b3_ref[...]  # (E, tT)
    h2 = jnp.maximum(h2, 0.0)
    q2 = jnp.dot(w4_ref[...], h2, preferred_element_type=jnp.float32) + b4_ref[...]      # (E, tT)

    # --- norm_out: LayerNorm over embedding_dim E (sublane axis) ---
    mu2 = jnp.mean(q2, axis=0, keepdims=True)
    var2 = jnp.mean((q2 - mu2) ** 2, axis=0, keepdims=True)
    q2 = (q2 - mu2) * jax.lax.rsqrt(var2 + 1e-5) * gout_ref[...] + bout_ref[...]

    q_ref[0] = q2.astype(q_ref.dtype)
    idx_ref[0] = idx2d.astype(jnp.int32)


def _token_tile(T):
    """Largest lane-friendly tile (multiple of 128, <= 512) dividing T."""
    if T % 128 != 0:
        return T  # fall back to full extent (block dim == array dim is always legal)
    for cand in (512, 384, 256, 128):
        if T % cand == 0:
            return cand
    return 128


def _build_pallas_call(B, T, E, D, K, tT):
    nT = T // tT
    grid_spec = pltpu.PrefetchScalarGridSpec(
        num_scalar_prefetch=1,                                    # labels
        grid=(B, nT),
        in_specs=[
            pl.BlockSpec((1, E, tT), lambda b, t, lab: (b, 0, t)),        # features (B, E, T)
            pl.BlockSpec((1, K, D), lambda b, t, lab: (lab[b], 0, 0)),    # class codebook
            pl.BlockSpec((1, K, 1), lambda b, t, lab: (lab[b], 0, 0)),    # ||cb||^2
            pl.BlockSpec((1, E, K), lambda b, t, lab: (lab[b], 0, 0)),    # W3 @ cb^T
            pl.BlockSpec((E, E), lambda b, t, lab: (0, 0)),               # w1
            pl.BlockSpec((E, 1), lambda b, t, lab: (0, 0)),               # b1
            pl.BlockSpec((D, E), lambda b, t, lab: (0, 0)),               # w2
            pl.BlockSpec((D, 1), lambda b, t, lab: (0, 0)),               # b2
            pl.BlockSpec((D, 1), lambda b, t, lab: (0, 0)),               # norm_in gamma
            pl.BlockSpec((D, 1), lambda b, t, lab: (0, 0)),               # norm_in beta
            pl.BlockSpec((E, 1), lambda b, t, lab: (0, 0)),               # b3
            pl.BlockSpec((E, E), lambda b, t, lab: (0, 0)),               # w4
            pl.BlockSpec((E, 1), lambda b, t, lab: (0, 0)),               # b4
            pl.BlockSpec((E, 1), lambda b, t, lab: (0, 0)),               # norm_out gamma
            pl.BlockSpec((E, 1), lambda b, t, lab: (0, 0)),               # norm_out beta
        ],
        out_specs=[
            pl.BlockSpec((1, E, tT), lambda b, t, lab: (b, 0, t)),        # quantized (B, E, T)
            pl.BlockSpec((1, 1, tT), lambda b, t, lab: (b, 0, t)),        # indices   (B, 1, T)
        ],
    )
    flops = 2 * B * T * (E * E + E * D + D * K + K * E + E * E)
    bytes_accessed = 4 * (2 * B * E * T + B * T            # features in + q out + idx out
                          + (K * D + K + E * K)            # per-class tensors
                          + 2 * E * E + D * E + 4 * E + 3 * D)
    cost = pl.CostEstimate(flops=flops, transcendentals=2 * B * T,
                           bytes_accessed=bytes_accessed)
    return pl.pallas_call(
        _vq_kernel,
        out_shape=(
            jax.ShapeDtypeStruct((B, E, T), jnp.float32),
            jax.ShapeDtypeStruct((B, 1, T), jnp.int32),
        ),
        grid_spec=grid_spec,
        compiler_params=pltpu.CompilerParams(
            dimension_semantics=("parallel", "parallel")),   # megacore-shard on v7x
        cost_estimate=cost,
    )


# ------------------------------ JAX wrapper ---------------------------------
@functools.partial(jax.jit, static_argnames=("nclasses",))
def vector_quantizer_forward(inputs, labels, params, nclasses):
    """Eval-mode forward of VectorQuantizer (quantize='spatial', gumble=False).

    inputs: (B, C, H, W) float32 (NCHW), labels: (B,) int32.
    Returns (quantized (B,C,H,W), encoding_indices (B, H*W), loss, perplexity).
    """
    del nclasses  # class count is carried by the codebook leading dim
    B, C, H, W = inputs.shape
    T = H * W
    E = C
    codebooks = params["codebooks"]                       # (nclasses, K, D)
    K, D = codebooks.shape[1], codebooks.shape[2]
    beta = params["beta"]

    # flatten(-2,-1) only; the kernel works in channel-major (E, T) layout so the
    # reference's permute(0,2,1) (and the inverse permute on the way out) vanish.
    x = inputs.reshape(B, C, T)

    # Tiny per-class precomputes (wrapper side, once per call):
    cb_sq = jnp.sum(codebooks * codebooks, axis=-1, keepdims=True)     # (nclasses, K, 1)
    cbw3 = jnp.einsum("ed,ckd->cek", params["w3"], codebooks)          # (nclasses, E, K)

    tT = _token_tile(T)
    call = _build_pallas_call(B, T, E, D, K, tT)
    q_bet, idx = call(
        labels.astype(jnp.int32), x,
        codebooks, cb_sq, cbw3,
        params["w1"], params["b1"], params["w2"], params["b2"],
        params["g_in"], params["bt_in"],
        params["b3"], params["w4"], params["b4"],
        params["g_out"], params["bt_out"],
    )

    # (B, E, T) is already channel-major -> straight reshape back to NCHW.
    quantized = q_bet.reshape(B, C, H, W)

    # compute_baseloss (loss_type=0): q_latent + beta * e_latent.
    # detach() only affects gradients; forward value is (1 + beta) * MSE.
    mse = jnp.mean((quantized - inputs) ** 2)
    loss = (1.0 + beta) * mse
    # TODO(synk): hessian_penalty (stochastic probe of project_in) and
    #             get_cb_variance are external/undefined helpers; omitted here.

    # straight-through estimator (value == quantized; gradient flows to inputs).
    quantized_st = inputs + jax.lax.stop_gradient(quantized - inputs)

    # Perplexity exactly as the reference: one-hot encodings (B, T, K) -> mean over
    # batch -> (T, K) -> exp(-mean(p*log(p+1e-10))), rebuilt from indices to avoid
    # the (B, T, K) one-hot HBM round-trip.
    encoding_indices = idx.reshape(B, T)
    onehot = (encoding_indices[..., None] ==
              jnp.arange(K, dtype=jnp.int32)).astype(jnp.float32)       # (B, T, K)
    avg_probs = jnp.mean(onehot, axis=0)                                # (T, K)
    perplexity = jnp.exp(-jnp.mean(avg_probs * jnp.log(avg_probs + 1e-10)))

    return quantized_st, encoding_indices, loss, perplexity


# ----------------------------- parameter init --------------------------------
def init_params(key, E, D, K, nclasses, beta=0.25):
    ks = jax.random.split(key, 9)

    def lin_w(k, out_dim, in_dim):
        bound = 1.0 / (in_dim ** 0.5)
        return jax.random.uniform(k, (out_dim, in_dim), jnp.float32, -bound, bound)

    def lin_b(k, out_dim, fan_in):
        bound = 1.0 / (fan_in ** 0.5)
        return jax.random.uniform(k, (out_dim, 1), jnp.float32, -bound, bound)

    return {
        "codebooks": jax.random.normal(ks[0], (nclasses, K, D), jnp.float32),  # nn.Embedding ~ N(0,1)
        # project_in: Linear(E,E) -> ReLU -> Linear(E,D)   (weights stored (out, in))
        "w1": lin_w(ks[1], E, E), "b1": lin_b(ks[2], E, E),
        "w2": lin_w(ks[3], D, E), "b2": lin_b(ks[4], D, E),
        # norm_in: LayerNorm(D)
        "g_in": jnp.ones((D, 1), jnp.float32), "bt_in": jnp.zeros((D, 1), jnp.float32),
        # project_out: Linear(D,E) -> ReLU -> Linear(E,E)
        "w3": lin_w(ks[5], E, D), "b3": lin_b(ks[6], E, D),
        "w4": lin_w(ks[7], E, E), "b4": lin_b(ks[8], E, E),
        # norm_out: LayerNorm(E)
        "g_out": jnp.ones((E, 1), jnp.float32), "bt_out": jnp.zeros((E, 1), jnp.float32),
        "beta": jnp.float32(beta),
    }


if __name__ == "__main__":
    # Small deterministic config: B=2, C=embedding_dim=32, H=W=16,
    # num_embeddings=16, codebook_dim=8, nclasses=3.
    B, C, Hs, Ws = 2, 32, 16, 16
    K, D, NCLASSES = 16, 8, 3

    key = jax.random.PRNGKey(0)
    k_x, k_lbl, k_p = jax.random.split(key, 3)

    x = jax.random.normal(k_x, (B, C, Hs, Ws), jnp.float32)
    labels = jax.random.randint(k_lbl, (B,), 0, NCLASSES, jnp.int32)
    params = init_params(k_p, C, D, K, NCLASSES, beta=0.25)

    quantized, enc_idx, loss, perplexity = vector_quantizer_forward(
        x, labels, params, nclasses=NCLASSES)
    jax.block_until_ready((quantized, enc_idx, loss, perplexity))

    assert quantized.shape == (B, C, Hs, Ws)
    assert enc_idx.shape == (B, Hs * Ws)
    assert loss.shape == () and perplexity.shape == ()
    print("KERNEL_OK")
</pallas_src>

<mosaic_0001>
module attributes {stable_mosaic.version = 11 : i64} {
  func.func @_vq_kernel(%arg0: i32, %arg1: i32, %arg2: memref<2xi32, #tpu.memory_space<smem>>, %arg3: memref<1x32x256xf32, #tpu.memory_space<vmem>>, %arg4: memref<1x16x8xf32, #tpu.memory_space<vmem>>, %arg5: memref<1x16x1xf32, #tpu.memory_space<vmem>>, %arg6: memref<1x32x16xf32, #tpu.memory_space<vmem>>, %arg7: memref<32x32xf32, #tpu.memory_space<vmem>>, %arg8: memref<32x1xf32, #tpu.memory_space<vmem>>, %arg9: memref<8x32xf32, #tpu.memory_space<vmem>>, %arg10: memref<8x1xf32, #tpu.memory_space<vmem>>, %arg11: memref<8x1xf32, #tpu.memory_space<vmem>>, %arg12: memref<8x1xf32, #tpu.memory_space<vmem>>, %arg13: memref<32x1xf32, #tpu.memory_space<vmem>>, %arg14: memref<32x32xf32, #tpu.memory_space<vmem>>, %arg15: memref<32x1xf32, #tpu.memory_space<vmem>>, %arg16: memref<32x1xf32, #tpu.memory_space<vmem>>, %arg17: memref<32x1xf32, #tpu.memory_space<vmem>>, %arg18: memref<1x32x256xf32, #tpu.memory_space<vmem>>, %arg19: memref<1x1x256xi32, #tpu.memory_space<vmem>>) attributes {dimension_semantics = [#tpu.dimension_semantics<parallel>, #tpu.dimension_semantics<parallel>], iteration_bounds = array<i64: 2, 1>, scalar_prefetch = 1 : i64, scratch_operands = 0 : i64, tpu.core_type = #tpu.core_type<tc>, window_params = [{transform_indices = @transform_0, window_bounds = array<i64: 1, 32, 256>}, {transform_indices = @transform_1, window_bounds = array<i64: 1, 16, 8>}, {transform_indices = @transform_2, window_bounds = array<i64: 1, 16, 1>}, {transform_indices = @transform_3, window_bounds = array<i64: 1, 32, 16>}, {pipeline_mode = #tpu.pipeline_mode<synchronous>, transform_indices = @transform_4, window_bounds = array<i64: 32, 32>}, {pipeline_mode = #tpu.pipeline_mode<synchronous>, transform_indices = @transform_5, window_bounds = array<i64: 32, 1>}, {pipeline_mode = #tpu.pipeline_mode<synchronous>, transform_indices = @transform_6, window_bounds = array<i64: 8, 32>}, {pipeline_mode = #tpu.pipeline_mode<synchronous>, transform_indices = @transform_7, window_bounds = array<i64: 8, 1>}, {pipeline_mode = #tpu.pipeline_mode<synchronous>, transform_indices = @transform_8, window_bounds = array<i64: 8, 1>}, {pipeline_mode = #tpu.pipeline_mode<synchronous>, transform_indices = @transform_9, window_bounds = array<i64: 8, 1>}, {pipeline_mode = #tpu.pipeline_mode<synchronous>, transform_indices = @transform_10, window_bounds = array<i64: 32, 1>}, {pipeline_mode = #tpu.pipeline_mode<synchronous>, transform_indices = @transform_11, window_bounds = array<i64: 32, 32>}, {pipeline_mode = #tpu.pipeline_mode<synchronous>, transform_indices = @transform_12, window_bounds = array<i64: 32, 1>}, {pipeline_mode = #tpu.pipeline_mode<synchronous>, transform_indices = @transform_13, window_bounds = array<i64: 32, 1>}, {pipeline_mode = #tpu.pipeline_mode<synchronous>, transform_indices = @transform_14, window_bounds = array<i64: 32, 1>}, {transform_indices = @transform_15, window_bounds = array<i64: 1, 32, 256>}, {transform_indices = @transform_16, window_bounds = array<i64: 1, 1, 256>}]} {
    %c0 = arith.constant 0 : index
    %c0_0 = arith.constant 0 : index
    %c0_1 = arith.constant 0 : index
    %0 = vector.load %arg3[%c0, %c0_0, %c0_1] : memref<1x32x256xf32, #tpu.memory_space<vmem>>, vector<1x32x256xf32>
    %1 = vector.shape_cast %0 : vector<1x32x256xf32> to vector<32x256xf32>
    %c0_2 = arith.constant 0 : index
    %c0_3 = arith.constant 0 : index
    %2 = vector.load %arg7[%c0_2, %c0_3] : memref<32x32xf32, #tpu.memory_space<vmem>>, vector<32x32xf32>
    %cst = arith.constant dense<0.000000e+00> : vector<32x256xf32>
    %3 = tpu.matmul %2, %1, %cst {dimension_numbers = #tpu.dot_dimension_numbers<[1], [0], [0], [1], [0, 0, 1, 1], [], []>} : vector<32x32xf32>, vector<32x256xf32>, vector<32x256xf32> -> vector<32x256xf32>
    %c0_4 = arith.constant 0 : index
    %c0_5 = arith.constant 0 : index
    %4 = vector.load %arg8[%c0_4, %c0_5] : memref<32x1xf32, #tpu.memory_space<vmem>>, vector<32x1xf32>
    %5 = vector.broadcast %4 : vector<32x1xf32> to vector<32x256xf32>
    %6 = arith.addf %3, %5 : vector<32x256xf32>
    %cst_6 = arith.constant 0.000000e+00 : f32
    %7 = vector.broadcast %cst_6 : f32 to vector<32x256xf32>
    %8 = arith.maximumf %6, %7 : vector<32x256xf32>
    %c0_7 = arith.constant 0 : index
    %c0_8 = arith.constant 0 : index
    %9 = vector.load %arg9[%c0_7, %c0_8] : memref<8x32xf32, #tpu.memory_space<vmem>>, vector<8x32xf32>
    %cst_9 = arith.constant dense<0.000000e+00> : vector<8x256xf32>
    %10 = tpu.matmul %9, %8, %cst_9 {dimension_numbers = #tpu.dot_dimension_numbers<[1], [0], [0], [1], [0, 0, 1, 1], [], []>} : vector<8x32xf32>, vector<32x256xf32>, vector<8x256xf32> -> vector<8x256xf32>
    %c0_10 = arith.constant 0 : index
    %c0_11 = arith.constant 0 : index
    %11 = vector.load %arg10[%c0_10, %c0_11] : memref<8x1xf32, #tpu.memory_space<vmem>>, vector<8x1xf32>
    %12 = vector.broadcast %11 : vector<8x1xf32> to vector<8x256xf32>
    %13 = arith.addf %10, %12 : vector<8x256xf32>
    %cst_12 = arith.constant dense<0.000000e+00> : vector<256xf32>
    %14 = vector.multi_reduction <add>, %13, %cst_12 [0] : vector<8x256xf32> to vector<256xf32>
    %15 = vector.shape_cast %14 : vector<256xf32> to vector<1x256xf32>
    %cst_13 = arith.constant 8.000000e+00 : f32
    %16 = vector.broadcast %cst_13 : f32 to vector<1x256xf32>
    %17 = arith.divf %15, %16 : vector<1x256xf32>
    %18 = vector.broadcast %17 : vector<1x256xf32> to vector<8x256xf32>
    %19 = arith.subf %13, %18 : vector<8x256xf32>
    %20 = arith.mulf %19, %19 : vector<8x256xf32>
    %cst_14 = arith.constant dense<0.000000e+00> : vector<256xf32>
    %21 = vector.multi_reduction <add>, %20, %cst_14 [0] : vector<8x256xf32> to vector<256xf32>
    %22 = vector.shape_cast %21 : vector<256xf32> to vector<1x256xf32>
    %cst_15 = arith.constant 8.000000e+00 : f32
    %23 = vector.broadcast %cst_15 : f32 to vector<1x256xf32>
    %24 = arith.divf %22, %23 : vector<1x256xf32>
    %25 = vector.broadcast %17 : vector<1x256xf32> to vector<8x256xf32>
    %26 = arith.subf %13, %25 : vector<8x256xf32>
    %cst_16 = arith.constant 9.99999974E-6 : f32
    %27 = vector.broadcast %cst_16 : f32 to vector<1x256xf32>
    %28 = arith.addf %24, %27 : vector<1x256xf32>
    %29 = math.rsqrt %28 : vector<1x256xf32>
    %30 = vector.broadcast %29 : vector<1x256xf32> to vector<8x256xf32>
    %31 = arith.mulf %26, %30 : vector<8x256xf32>
    %c0_17 = arith.constant 0 : index
    %c0_18 = arith.constant 0 : index
    %32 = vector.load %arg11[%c0_17, %c0_18] : memref<8x1xf32, #tpu.memory_space<vmem>>, vector<8x1xf32>
    %33 = vector.broadcast %32 : vector<8x1xf32> to vector<8x256xf32>
    %34 = arith.mulf %31, %33 : vector<8x256xf32>
    %c0_19 = arith.constant 0 : index
    %c0_20 = arith.constant 0 : index
    %35 = vector.load %arg12[%c0_19, %c0_20] : memref<8x1xf32, #tpu.memory_space<vmem>>, vector<8x1xf32>
    %36 = vector.broadcast %35 : vector<8x1xf32> to vector<8x256xf32>
    %37 = arith.addf %34, %36 : vector<8x256xf32>
    %c0_21 = arith.constant 0 : index
    %c0_22 = arith.constant 0 : index
    %c0_23 = arith.constant 0 : index
    %38 = vector.load %arg4[%c0_21, %c0_22, %c0_23] : memref<1x16x8xf32, #tpu.memory_space<vmem>>, vector<1x16x8xf32>
    %39 = vector.shape_cast %38 : vector<1x16x8xf32> to vector<16x8xf32>
    %c0_24 = arith.constant 0 : index
    %c0_25 = arith.constant 0 : index
    %c0_26 = arith.constant 0 : index
    %40 = vector.load %arg5[%c0_24, %c0_25, %c0_26] : memref<1x16x1xf32, #tpu.memory_space<vmem>>, vector<1x16x1xf32>
    %41 = vector.shape_cast %40 : vector<1x16x1xf32> to vector<16x1xf32>
    %cst_27 = arith.constant dense<0.000000e+00> : vector<16x256xf32>
    %42 = tpu.matmul %39, %37, %cst_27 {dimension_numbers = #tpu.dot_dimension_numbers<[1], [0], [0], [1], [0, 0, 1, 1], [], []>} : vector<16x8xf32>, vector<8x256xf32>, vector<16x256xf32> -> vector<16x256xf32>
    %cst_28 = arith.constant 2.000000e+00 : f32
    %43 = vector.broadcast %cst_28 : f32 to vector<16x256xf32>
    %44 = arith.mulf %43, %42 : vector<16x256xf32>
    %45 = vector.broadcast %41 : vector<16x1xf32> to vector<16x256xf32>
    %46 = arith.subf %45, %44 : vector<16x256xf32>
    %cst_29 = arith.constant dense<0x7F800000> : vector<256xf32>
    %47 = vector.multi_reduction <minimumf>, %46, %cst_29 [0] : vector<16x256xf32> to vector<256xf32>
    %48 = vector.shape_cast %47 : vector<256xf32> to vector<1x256xf32>
    %49 = tpu.iota {dimensions = array<i32: 0>} : vector<16x256xi32>
    %50 = vector.broadcast %48 : vector<1x256xf32> to vector<16x256xf32>
    %51 = arith.cmpf ole, %46, %50 : vector<16x256xf32>
    %c16_i32 = arith.constant 16 : i32
    %52 = vector.broadcast %c16_i32 : i32 to vector<16x256xi32>
    %53 = arith.select %51, %49, %52 : vector<16x256xi1>, vector<16x256xi32>
    %cst_30 = arith.constant dense<2147483647> : vector<256xi32>
    %54 = vector.multi_reduction <minsi>, %53, %cst_30 [0] : vector<16x256xi32> to vector<256xi32>
    %55 = vector.shape_cast %54 : vector<256xi32> to vector<1x256xi32>
    %56 = vector.broadcast %55 : vector<1x256xi32> to vector<16x256xi32>
    %57 = arith.cmpi eq, %49, %56 : vector<16x256xi32>
    %58 = arith.extui %57 : vector<16x256xi1> to vector<16x256xi32>
    %59 = arith.sitofp %58 : vector<16x256xi32> to vector<16x256xf32>
    %c0_31 = arith.constant 0 : index
    %c0_32 = arith.constant 0 : index
    %c0_33 = arith.constant 0 : index
    %60 = vector.load %arg6[%c0_31, %c0_32, %c0_33] : memref<1x32x16xf32, #tpu.memory_space<vmem>>, vector<1x32x16xf32>
    %61 = vector.shape_cast %60 : vector<1x32x16xf32> to vector<32x16xf32>
    %cst_34 = arith.constant dense<0.000000e+00> : vector<32x256xf32>
    %62 = tpu.matmul %61, %59, %cst_34 {dimension_numbers = #tpu.dot_dimension_numbers<[1], [0], [0], [1], [0, 0, 1, 1], [], []>} : vector<32x16xf32>, vector<16x256xf32>, vector<32x256xf32> -> vector<32x256xf32>
    %c0_35 = arith.constant 0 : index
    %c0_36 = arith.constant 0 : index
    %63 = vector.load %arg13[%c0_35, %c0_36] : memref<32x1xf32, #tpu.memory_space<vmem>>, vector<32x1xf32>
    %64 = vector.broadcast %63 : vector<32x1xf32> to vector<32x256xf32>
    %65 = arith.addf %62, %64 : vector<32x256xf32>
    %cst_37 = arith.constant 0.000000e+00 : f32
    %66 = vector.broadcast %cst_37 : f32 to vector<32x256xf32>
    %67 = arith.maximumf %65, %66 : vector<32x256xf32>
    %c0_38 = arith.constant 0 : index
    %c0_39 = arith.constant 0 : index
    %68 = vector.load %arg14[%c0_38, %c0_39] : memref<32x32xf32, #tpu.memory_space<vmem>>, vector<32x32xf32>
    %cst_40 = arith.constant dense<0.000000e+00> : vector<32x256xf32>
    %69 = tpu.matmul %68, %67, %cst_40 {dimension_numbers = #tpu.dot_dimension_numbers<[1], [0], [0], [1], [0, 0, 1, 1], [], []>} : vector<32x32xf32>, vector<32x256xf32>, vector<32x256xf32> -> vector<32x256xf32>
    %c0_41 = arith.constant 0 : index
    %c0_42 = arith.constant 0 : index
    %70 = vector.load %arg15[%c0_41, %c0_42] : memref<32x1xf32, #tpu.memory_space<vmem>>, vector<32x1xf32>
    %71 = vector.broadcast %70 : vector<32x1xf32> to vector<32x256xf32>
    %72 = arith.addf %69, %71 : vector<32x256xf32>
    %cst_43 = arith.constant dense<0.000000e+00> : vector<256xf32>
    %73 = vector.multi_reduction <add>, %72, %cst_43 [0] : vector<32x256xf32> to vector<256xf32>
    %74 = vector.shape_cast %73 : vector<256xf32> to vector<1x256xf32>
    %cst_44 = arith.constant 3.200000e+01 : f32
    %75 = vector.broadcast %cst_44 : f32 to vector<1x256xf32>
    %76 = arith.divf %74, %75 : vector<1x256xf32>
    %77 = vector.broadcast %76 : vector<1x256xf32> to vector<32x256xf32>
    %78 = arith.subf %72, %77 : vector<32x256xf32>
    %79 = arith.mulf %78, %78 : vector<32x256xf32>
    %cst_45 = arith.constant dense<0.000000e+00> : vector<256xf32>
    %80 = vector.multi_reduction <add>, %79, %cst_45 [0] : vector<32x256xf32> to vector<256xf32>
    %81 = vector.shape_cast %80 : vector<256xf32> to vector<1x256xf32>
    %cst_46 = arith.constant 3.200000e+01 : f32
    %82 = vector.broadcast %cst_46 : f32 to vector<1x256xf32>
    %83 = arith.divf %81, %82 : vector<1x256xf32>
    %84 = vector.broadcast %76 : vector<1x256xf32> to vector<32x256xf32>
    %85 = arith.subf %72, %84 : vector<32x256xf32>
    %cst_47 = arith.constant 9.99999974E-6 : f32
    %86 = vector.broadcast %cst_47 : f32 to vector<1x256xf32>
    %87 = arith.addf %83, %86 : vector<1x256xf32>
    %88 = math.rsqrt %87 : vector<1x256xf32>
    %89 = vector.broadcast %88 : vector<1x256xf32> to vector<32x256xf32>
    %90 = arith.mulf %85, %89 : vector<32x256xf32>
    %c0_48 = arith.constant 0 : index
    %c0_49 = arith.constant 0 : index
    %91 = vector.load %arg16[%c0_48, %c0_49] : memref<32x1xf32, #tpu.memory_space<vmem>>, vector<32x1xf32>
    %92 = vector.broadcast %91 : vector<32x1xf32> to vector<32x256xf32>
    %93 = arith.mulf %90, %92 : vector<32x256xf32>
    %c0_50 = arith.constant 0 : index
    %c0_51 = arith.constant 0 : index
    %94 = vector.load %arg17[%c0_50, %c0_51] : memref<32x1xf32, #tpu.memory_space<vmem>>, vector<32x1xf32>
    %95 = vector.broadcast %94 : vector<32x1xf32> to vector<32x256xf32>
    %96 = arith.addf %93, %95 : vector<32x256xf32>
    %c0_52 = arith.constant 0 : index
    %c0_53 = arith.constant 0 : index
    %c0_54 = arith.constant 0 : index
    %97 = vector.load %arg18[%c0_52, %c0_53, %c0_54] : memref<1x32x256xf32, #tpu.memory_space<vmem>>, vector<1x32x256xf32>
    %98 = vector.shape_cast %97 : vector<1x32x256xf32> to vector<32x256xf32>
    %99 = vector.shape_cast %96 : vector<32x256xf32> to vector<1x32x256xf32>
    tpu.vector_store %arg18[%c0_52, %c0_53, %c0_54], %99 {strides = array<i32>} : memref<1x32x256xf32, #tpu.memory_space<vmem>>, vector<1x32x256xf32>,
    %c0_55 = arith.constant 0 : index
    %c0_56 = arith.constant 0 : index
    %c0_57 = arith.constant 0 : index
    %100 = vector.load %arg19[%c0_55, %c0_56, %c0_57] : memref<1x1x256xi32, #tpu.memory_space<vmem>>, vector<1x1x256xi32>
    %101 = vector.shape_cast %100 : vector<1x1x256xi32> to vector<1x256xi32>
    %102 = vector.shape_cast %55 : vector<1x256xi32> to vector<1x1x256xi32>
    tpu.vector_store %arg19[%c0_55, %c0_56, %c0_57], %102 {strides = array<i32>} : memref<1x1x256xi32, #tpu.memory_space<vmem>>, vector<1x1x256xi32>,
    return
  }
  func.func @transform_0(%arg0: i32, %arg1: i32, %arg2: memref<2xi32, #tpu.memory_space<smem>>) -> (i32, i32, i32) {
    %c0_i32 = arith.constant 0 : i32
    %c0_i32_0 = arith.constant 0 : i32
    return %arg0, %c0_i32, %arg1 : i32, i32, i32
  }
  func.func @transform_1(%arg0: i32, %arg1: i32, %arg2: memref<2xi32, #tpu.memory_space<smem>>) -> (i32, i32, i32) {
    %0 = arith.index_cast %arg0 : i32 to index
    %1 = memref.load %arg2[%0] : memref<2xi32, #tpu.memory_space<smem>>
    %c0_i32 = arith.constant 0 : i32
    %c0_i32_0 = arith.constant 0 : i32
    %c0_i32_1 = arith.constant 0 : i32
    return %1, %c0_i32, %c0_i32_0 : i32, i32, i32
  }
  func.func @transform_2(%arg0: i32, %arg1: i32, %arg2: memref<2xi32, #tpu.memory_space<smem>>) -> (i32, i32, i32) {
    %0 = arith.index_cast %arg0 : i32 to index
    %1 = memref.load %arg2[%0] : memref<2xi32, #tpu.memory_space<smem>>
    %c0_i32 = arith.constant 0 : i32
    %c0_i32_0 = arith.constant 0 : i32
    %c0_i32_1 = arith.constant 0 : i32
    return %1, %c0_i32, %c0_i32_0 : i32, i32, i32
  }
  func.func @transform_3(%arg0: i32, %arg1: i32, %arg2: memref<2xi32, #tpu.memory_space<smem>>) -> (i32, i32, i32) {
    %0 = arith.index_cast %arg0 : i32 to index
    %1 = memref.load %arg2[%0] : memref<2xi32, #tpu.memory_space<smem>>
    %c0_i32 = arith.constant 0 : i32
    %c0_i32_0 = arith.constant 0 : i32
    %c0_i32_1 = arith.constant 0 : i32
    return %1, %c0_i32, %c0_i32_0 : i32, i32, i32
  }
  func.func @transform_4(%arg0: i32, %arg1: i32, %arg2: memref<2xi32, #tpu.memory_space<smem>>) -> (i32, i32) {
    %c0_i32 = arith.constant 0 : i32
    %c0_i32_0 = arith.constant 0 : i32
    %c0_i32_1 = arith.constant 0 : i32
    return %c0_i32, %c0_i32_0 : i32, i32
  }
  func.func @transform_5(%arg0: i32, %arg1: i32, %arg2: memref<2xi32, #tpu.memory_space<smem>>) -> (i32, i32) {
    %c0_i32 = arith.constant 0 : i32
    %c0_i32_0 = arith.constant 0 : i32
    %c0_i32_1 = arith.constant 0 : i32
    return %c0_i32, %c0_i32_0 : i32, i32
  }
  func.func @transform_6(%arg0: i32, %arg1: i32, %arg2: memref<2xi32, #tpu.memory_space<smem>>) -> (i32, i32) {
    %c0_i32 = arith.constant 0 : i32
    %c0_i32_0 = arith.constant 0 : i32
    %c0_i32_1 = arith.constant 0 : i32
    return %c0_i32, %c0_i32_0 : i32, i32
  }
  func.func @transform_7(%arg0: i32, %arg1: i32, %arg2: memref<2xi32, #tpu.memory_space<smem>>) -> (i32, i32) {
    %c0_i32 = arith.constant 0 : i32
    %c0_i32_0 = arith.constant 0 : i32
    %c0_i32_1 = arith.constant 0 : i32
    return %c0_i32, %c0_i32_0 : i32, i32
  }
  func.func @transform_8(%arg0: i32, %arg1: i32, %arg2: memref<2xi32, #tpu.memory_space<smem>>) -> (i32, i32) {
    %c0_i32 = arith.constant 0 : i32
    %c0_i32_0 = arith.constant 0 : i32
    %c0_i32_1 = arith.constant 0 : i32
    return %c0_i32, %c0_i32_0 : i32, i32
  }
  func.func @transform_9(%arg0: i32, %arg1: i32, %arg2: memref<2xi32, #tpu.memory_space<smem>>) -> (i32, i32) {
    %c0_i32 = arith.constant 0 : i32
    %c0_i32_0 = arith.constant 0 : i32
    %c0_i32_1 = arith.constant 0 : i32
    return %c0_i32, %c0_i32_0 : i32, i32
  }
  func.func @transform_10(%arg0: i32, %arg1: i32, %arg2: memref<2xi32, #tpu.memory_space<smem>>) -> (i32, i32) {
    %c0_i32 = arith.constant 0 : i32
    %c0_i32_0 = arith.constant 0 : i32
    %c0_i32_1 = arith.constant 0 : i32
    return %c0_i32, %c0_i32_0 : i32, i32
  }
  func.func @transform_11(%arg0: i32, %arg1: i32, %arg2: memref<2xi32, #tpu.memory_space<smem>>) -> (i32, i32) {
    %c0_i32 = arith.constant 0 : i32
    %c0_i32_0 = arith.constant 0 : i32
    %c0_i32_1 = arith.constant 0 : i32
    return %c0_i32, %c0_i32_0 : i32, i32
  }
  func.func @transform_12(%arg0: i32, %arg1: i32, %arg2: memref<2xi32, #tpu.memory_space<smem>>) -> (i32, i32) {
    %c0_i32 = arith.constant 0 : i32
    %c0_i32_0 = arith.constant 0 : i32
    %c0_i32_1 = arith.constant 0 : i32
    return %c0_i32, %c0_i32_0 : i32, i32
  }
  func.func @transform_13(%arg0: i32, %arg1: i32, %arg2: memref<2xi32, #tpu.memory_space<smem>>) -> (i32, i32) {
    %c0_i32 = arith.constant 0 : i32
    %c0_i32_0 = arith.constant 0 : i32
    %c0_i32_1 = arith.constant 0 : i32
    return %c0_i32, %c0_i32_0 : i32, i32
  }
  func.func @transform_14(%arg0: i32, %arg1: i32, %arg2: memref<2xi32, #tpu.memory_space<smem>>) -> (i32, i32) {
    %c0_i32 = arith.constant 0 : i32
    %c0_i32_0 = arith.constant 0 : i32
    %c0_i32_1 = arith.constant 0 : i32
    return %c0_i32, %c0_i32_0 : i32, i32
  }
  func.func @transform_15(%arg0: i32, %arg1: i32, %arg2: memref<2xi32, #tpu.memory_space<smem>>) -> (i32, i32, i32) {
    %c0_i32 = arith.constant 0 : i32
    %c0_i32_0 = arith.constant 0 : i32
    return %arg0, %c0_i32, %arg1 : i32, i32, i32
  }
  func.func @transform_16(%arg0: i32, %arg1: i32, %arg2: memref<2xi32, #tpu.memory_space<smem>>) -> (i32, i32, i32) {
    %c0_i32 = arith.constant 0 : i32
    %c0_i32_0 = arith.constant 0 : i32
    return %arg0, %c0_i32, %arg1 : i32, i32, i32
  }
}

</mosaic_0001>

<llo_original>
// kernel: vector_quantizer_forward.1
$region0: #{vector_quantizer_forward.1}
  #allocation0 [shape = 'u32[]', space=smem, size = 0x4, offset = 0x4, fixed_abs, tag = 'smem constant byte address 0x4 - core index']
  #allocation1 [shape = 'u32[144,128]{1,0:T(1,128)}', space=vmem, size = 0x12000, scoped, tag = 'internal scratch']
  #allocation2 [shape = 's32[1]{0}', space=sflag, size = 0x4, scoped, tag = 'scoped memory for vector_quantizer_forward.1']
  #allocation3 [shape = 'u8[512]{0}', space=smem, size = 0x200, scoped, tag = 'prefetched SMEM operand 0']
  %s0 = inlined_call_operand.vmem [shape: s32[2], index: 0, kind: input, shape index: {}]
  %s1 = inlined_call_operand.vmem [shape: f32[2,32,256], index: 1, kind: input, shape index: {}]
  %s2 = inlined_call_operand.vmem [shape: f32[3,16,8], index: 2, kind: input, shape index: {}]
  %s3 = inlined_call_operand.vmem [shape: f32[3,16,1], index: 3, kind: input, shape index: {}]
  %s4 = inlined_call_operand.vmem [shape: f32[3,32,16], index: 4, kind: input, shape index: {}]
  %s5 = inlined_call_operand.vmem [shape: f32[32,32], index: 5, kind: input, shape index: {}]
  %s6 = inlined_call_operand.vmem [shape: f32[32,1], index: 6, kind: input, shape index: {}]
  %s7 = inlined_call_operand.vmem [shape: f32[8,32], index: 7, kind: input, shape index: {}]
  %s8 = inlined_call_operand.vmem [shape: f32[8,1], index: 8, kind: input, shape index: {}]
  %s9 = inlined_call_operand.vmem [shape: f32[8,1], index: 9, kind: input, shape index: {}]
  %s10 = inlined_call_operand.vmem [shape: f32[8,1], index: 10, kind: input, shape index: {}]
  %s11 = inlined_call_operand.vmem [shape: f32[32,1], index: 11, kind: input, shape index: {}]
  %s12 = inlined_call_operand.vmem [shape: f32[32,32], index: 12, kind: input, shape index: {}]
  %s13 = inlined_call_operand.vmem [shape: f32[32,1], index: 13, kind: input, shape index: {}]
  %s14 = inlined_call_operand.vmem [shape: f32[32,1], index: 14, kind: input, shape index: {}]
  %s15 = inlined_call_operand.vmem [shape: f32[32,1], index: 15, kind: input, shape index: {}]
  %s16 = inlined_call_operand.vmem [shape: f32[2,32,256], index: 16, kind: output, shape index: {0}]
  %s17 = inlined_call_operand.vmem [shape: s32[2,1,256], index: 17, kind: output, shape index: {1}]
  %18 = xla_tuple %s16, %s17
  %s19 = sld [smem:[#allocation0]]
  $region101: #{vector_quantizer_forward.1} parent=0
    _
  %s21 = ssub.s32 1, %s19
  %s22 = scalar_select 0, %s21, %s19
  %s23 = sshll.u32 %s0, 4
  %s24 = int_to_ptr.vmem [resolvable:$true] %s23
  %26 = dma.vmem_to_smem %s24, 16, [#allocation3], [#allocation2]
  %27 = dma.done [#allocation2], 16
  %28 = sfence
  loop: start=0, step=1, limit=4
  $region2: #{vector_quantizer_forward.1} parent=0 // loop_pre_header
    _
  $region3: #{vector_quantizer_forward.1} parent=0 // loop_header
    %s30 = sphi 0, %s34
    %p31 = scmp.ge.s32.totalorder %s30, 4
    %s37 = sphi 0, %s49
    %s38 = sphi 0, %s45
    %s39 = sphi 0, %s37
    %s40 = sphi 0, %s38
    %s41 = sphi 0, %s39
    %s42 = sphi 0, %s40
    %s54 = sphi 0, %s56
    %s57 = sphi 0, %s54
    %s58 = sphi 0, %s57
    %s74 = sphi 0, %s58
    %s82 = sphi 0, %s84
    %s85 = sphi 0, %s82
    %s86 = sphi 0, %s85
    %s102 = sphi 0, %s86
    %s110 = sphi 0, %s112
    %s113 = sphi 0, %s110
    %s114 = sphi 0, %s113
    %s130 = sphi 0, %s114
    %s138 = sphi 0, %s140
    %s141 = sphi 0, %s138
    %s142 = sphi 0, %s141
    %s158 = sphi 0, %s142
    %s162 = sphi 0, %s162
    %s164 = sphi 0, %s162
    %s165 = sphi 0, %s164
    %s179 = sphi 0, %s165
    %s183 = sphi 0, %s183
    %s185 = sphi 0, %s183
    %s186 = sphi 0, %s185
    %s200 = sphi 0, %s186
    %s204 = sphi 0, %s204
    %s206 = sphi 0, %s204
    %s207 = sphi 0, %s206
    %s221 = sphi 0, %s207
    %s225 = sphi 0, %s225
    %s227 = sphi 0, %s225
    %s228 = sphi 0, %s227
    %s242 = sphi 0, %s228
    %s246 = sphi 0, %s246
    %s248 = sphi 0, %s246
    %s249 = sphi 0, %s248
    %s263 = sphi 0, %s249
    %s267 = sphi 0, %s267
    %s269 = sphi 0, %s267
    %s270 = sphi 0, %s269
    %s284 = sphi 0, %s270
    %s288 = sphi 0, %s288
    %s290 = sphi 0, %s288
    %s291 = sphi 0, %s290
    %s305 = sphi 0, %s291
    %s309 = sphi 0, %s309
    %s311 = sphi 0, %s309
    %s312 = sphi 0, %s311
    %s326 = sphi 0, %s312
    %s330 = sphi 0, %s330
    %s332 = sphi 0, %s330
    %s333 = sphi 0, %s332
    %s347 = sphi 0, %s333
    %s351 = sphi 0, %s351
    %s353 = sphi 0, %s351
    %s354 = sphi 0, %s353
    %s368 = sphi 0, %s354
    %s372 = sphi 0, %s372
    %s374 = sphi 0, %s372
    %s375 = sphi 0, %s374
    %s389 = sphi 0, %s375
    %s397 = sphi 0, %s399
    %s400 = sphi 0, %s397
    %s401 = sphi 0, %s400
    %s417 = sphi 0, %s401
    %s425 = sphi 0, %s427
    %s428 = sphi 0, %s425
    %s429 = sphi 0, %s428
    %s445 = sphi 0, %s429
  $region4: #{vector_quantizer_forward.1} parent=0 // loop_header_branch
    %33 = sbr.rel (%p31) target = $region8
  $region5: #{vector_quantizer_forward.1} parent=0 // loop_body
    %s35 = ssub.s32 %s30, 1
    %s36 = ssub.s32 %s30, 2
    %s43 = sadd.s32 1, %s38
    %p44 = scmp.ge.s32.totalorder %s43, 1
    %s45 = scalar_select %p44, 0, %s43
    %s46 = sadd.s32 1, %s37
    %s47 = scalar_select %p44, %s46, %s37
    %p48 = scmp.ge.s32.totalorder %s47, 2
    %s49 = scalar_select %p48, 0, %s47
    %s50 = ssub.s32 %s37, %s49
    %s51 = ssub.s32 %s38, %s45
    %s52 = sor.u32 %s50, %s51
    %p53 = scmp.eq.s32.totalorder %s52, 0
    %s55 = sadd.s32 %s54, 1
    %s56 = scalar_select %p53, %s54, %s55
    %p59 = pneg %p53
    %p60 = scmp.eq.s32.totalorder %s30, 1
    %p61 = por %p59, %p60
    %p62 = scmp.ne.s32.totalorder %s54, %s57
    %p63 = scmp.eq.s32.totalorder %s30, 0
    %p64 = por %p62, %p63
    %p65 = scmp.ne.s32.totalorder %s54, %s57
    %p66 = scmp.eq.s32.totalorder %s35, 1
    %p67 = por %p65, %p66
    %p68 = scmp.ne.s32.totalorder %s57, %s58
    %p69 = scmp.eq.s32.totalorder %s35, 0
    %p70 = por %p68, %p69
    %p71 = scmp.ne.s32.totalorder %s57, %s58
    %p72 = scmp.eq.s32.totalorder %s36, 1
    %p73 = por %p71, %p72
    %p75 = scmp.ne.s32.totalorder %s58, %s74
    %p76 = scmp.eq.s32.totalorder %s36, 0
    %p77 = por %p75, %p76
    %s78 = sld [smem:[#allocation3 + %s37]]
    %s79 = sld [smem:[#allocation3 + %s49]]
    %s80 = ssub.s32 %s78, %s79
    %p81 = scmp.eq.s32.totalorder %s80, 0
    %s83 = sadd.s32 %s82, 1
    %s84 = scalar_select %p81, %s82, %s83
    %p87 = pneg %p81
    %p88 = scmp.eq.s32.totalorder %s30, 1
    %p89 = por %p87, %p88
    %p90 = scmp.ne.s32.totalorder %s82, %s85
    %p91 = scmp.eq.s32.totalorder %s30, 0
    %p92 = por %p90, %p91
    %p93 = scmp.ne.s32.totalorder %s82, %s85
    %p94 = scmp.eq.s32.totalorder %s35, 1
    %p95 = por %p93, %p94
    %p96 = scmp.ne.s32.totalorder %s85, %s86
    %p97 = scmp.eq.s32.totalorder %s35, 0
    %p98 = por %p96, %p97
    %p99 = scmp.ne.s32.totalorder %s85, %s86
    %p100 = scmp.eq.s32.totalorder %s36, 1
    %p101 = por %p99, %p100
    %p103 = scmp.ne.s32.totalorder %s86, %s102
    %p104 = scmp.eq.s32.totalorder %s36, 0
    %p105 = por %p103, %p104
    %s106 = sld [smem:[#allocation3 + %s37]]
    %s107 = sld [smem:[#allocation3 + %s49]]
    %s108 = ssub.s32 %s106, %s107
    %p109 = scmp.eq.s32.totalorder %s108, 0
    %s111 = sadd.s32 %s110, 1
    %s112 = scalar_select %p109, %s110, %s111
    %p115 = pneg %p109
    %p116 = scmp.eq.s32.totalorder %s30, 1
    %p117 = por %p115, %p116
    %p118 = scmp.ne.s32.totalorder %s110, %s113
    %p119 = scmp.eq.s32.totalorder %s30, 0
    %p120 = por %p118, %p119
    %p121 = scmp.ne.s32.totalorder %s110, %s113
    %p122 = scmp.eq.s32.totalorder %s35, 1
    %p123 = por %p121, %p122
    %p124 = scmp.ne.s32.totalorder %s113, %s114
    %p125 = scmp.eq.s32.totalorder %s35, 0
    %p126 = por %p124, %p125
    %p127 = scmp.ne.s32.totalorder %s113, %s114
    %p128 = scmp.eq.s32.totalorder %s36, 1
    %p129 = por %p127, %p128
    %p131 = scmp.ne.s32.totalorder %s114, %s130
    %p132 = scmp.eq.s32.totalorder %s36, 0
    %p133 = por %p131, %p132
    %s134 = sld [smem:[#allocation3 + %s37]]
    %s135 = sld [smem:[#allocation3 + %s49]]
    %s136 = ssub.s32 %s134, %s135
    %p137 = scmp.eq.s32.totalorder %s136, 0
    %s139 = sadd.s32 %s138, 1
    %s140 = scalar_select %p137, %s138, %s139
    %p143 = pneg %p137
    %p144 = scmp.eq.s32.totalorder %s30, 1
    %p145 = por %p143, %p144
    %p146 = scmp.ne.s32.totalorder %s138, %s141
    %p147 = scmp.eq.s32.totalorder %s30, 0
    %p148 = por %p146, %p147
    %p149 = scmp.ne.s32.totalorder %s138, %s141
    %p150 = scmp.eq.s32.totalorder %s35, 1
    %p151 = por %p149, %p150
    %p152 = scmp.ne.s32.totalorder %s141, %s142
    %p153 = scmp.eq.s32.totalorder %s35, 0
    %p154 = por %p152, %p153
    %p155 = scmp.ne.s32.totalorder %s141, %s142
    %p156 = scmp.eq.s32.totalorder %s36, 1
    %p157 = por %p155, %p156
    %p159 = scmp.ne.s32.totalorder %s142, %s158
    %p160 = scmp.eq.s32.totalorder %s36, 0
    %p161 = por %p159, %p160
    %s163 = sadd.s32 %s162, 1
    %p166 = scmp.eq.s32.totalorder %s30, 1
    %p167 = scmp.ne.s32.totalorder %s162, %s164
    %p168 = scmp.eq.s32.totalorder %s30, 0
    %p169 = por %p167, %p168
    %p170 = scmp.ne.s32.totalorder %s162, %s164
    %p171 = scmp.eq.s32.totalorder %s35, 1
    %p172 = por %p170, %p171
    %p173 = scmp.ne.s32.totalorder %s164, %s165
    %p174 = scmp.eq.s32.totalorder %s35, 0
    %p175 = por %p173, %p174
    %p176 = scmp.ne.s32.totalorder %s164, %s165
    %p177 = scmp.eq.s32.totalorder %s36, 1
    %p178 = por %p176, %p177
    %p180 = scmp.ne.s32.totalorder %s165, %s179
    %p181 = scmp.eq.s32.totalorder %s36, 0
    %p182 = por %p180, %p181
    %s184 = sadd.s32 %s183, 1
    %p187 = scmp.eq.s32.totalorder %s30, 1
    %p188 = scmp.ne.s32.totalorder %s183, %s185
    %p189 = scmp.eq.s32.totalorder %s30, 0
    %p190 = por %p188, %p189
    %p191 = scmp.ne.s32.totalorder %s183, %s185
    %p192 = scmp.eq.s32.totalorder %s35, 1
    %p193 = por %p191, %p192
    %p194 = scmp.ne.s32.totalorder %s185, %s186
    %p195 = scmp.eq.s32.totalorder %s35, 0
    %p196 = por %p194, %p195
    %p197 = scmp.ne.s32.totalorder %s185, %s186
    %p198 = scmp.eq.s32.totalorder %s36, 1
    %p199 = por %p197, %p198
    %p201 = scmp.ne.s32.totalorder %s186, %s200
    %p202 = scmp.eq.s32.totalorder %s36, 0
    %p203 = por %p201, %p202
    %s205 = sadd.s32 %s204, 1
    %p208 = scmp.eq.s32.totalorder %s30, 1
    %p209 = scmp.ne.s32.totalorder %s204, %s206
    %p210 = scmp.eq.s32.totalorder %s30, 0
    %p211 = por %p209, %p210
    %p212 = scmp.ne.s32.totalorder %s204, %s206
    %p213 = scmp.eq.s32.totalorder %s35, 1
    %p214 = por %p212, %p213
    %p215 = scmp.ne.s32.totalorder %s206, %s207
    %p216 = scmp.eq.s32.totalorder %s35, 0
    %p217 = por %p215, %p216
    %p218 = scmp.ne.s32.totalorder %s206, %s207
    %p219 = scmp.eq.s32.totalorder %s36, 1
    %p220 = por %p218, %p219
    %p222 = scmp.ne.s32.totalorder %s207, %s221
    %p223 = scmp.eq.s32.totalorder %s36, 0
    %p224 = por %p222, %p223
    %s226 = sadd.s32 %s225, 1
    %p229 = scmp.eq.s32.totalorder %s30, 1
    %p230 = scmp.ne.s32.totalorder %s225, %s227
    %p231 = scmp.eq.s32.totalorder %s30, 0
    %p232 = por %p230, %p231
    %p233 = scmp.ne.s32.totalorder %s225, %s227
    %p234 = scmp.eq.s32.totalorder %s35, 1
    %p235 = por %p233, %p234
    %p236 = scmp.ne.s32.totalorder %s227, %s228
    %p237 = scmp.eq.s32.totalorder %s35, 0
    %p238 = por %p236, %p237
    %p239 = scmp.ne.s32.totalorder %s227, %s228
    %p240 = scmp.eq.s32.totalorder %s36, 1
    %p241 = por %p239, %p240
    %p243 = scmp.ne.s32.totalorder %s228, %s242
    %p244 = scmp.eq.s32.totalorder %s36, 0
    %p245 = por %p243, %p244
    %s247 = sadd.s32 %s246, 1
    %p250 = scmp.eq.s32.totalorder %s30, 1
    %p251 = scmp.ne.s32.totalorder %s246, %s248
    %p252 = scmp.eq.s32.totalorder %s30, 0
    %p253 = por %p251, %p252
    %p254 = scmp.ne.s32.totalorder %s246, %s248
    %p255 = scmp.eq.s32.totalorder %s35, 1
    %p256 = por %p254, %p255
    %p257 = scmp.ne.s32.totalorder %s248, %s249
    %p258 = scmp.eq.s32.totalorder %s35, 0
    %p259 = por %p257, %p258
    %p260 = scmp.ne.s32.totalorder %s248, %s249
    %p261 = scmp.eq.s32.totalorder %s36, 1
    %p262 = por %p260, %p261
    %p264 = scmp.ne.s32.totalorder %s249, %s263
    %p265 = scmp.eq.s32.totalorder %s36, 0
    %p266 = por %p264, %p265
    %s268 = sadd.s32 %s267, 1
    %p271 = scmp.eq.s32.totalorder %s30, 1
    %p272 = scmp.ne.s32.totalorder %s267, %s269
    %p273 = scmp.eq.s32.totalorder %s30, 0
    %p274 = por %p272, %p273
    %p275 = scmp.ne.s32.totalorder %s267, %s269
    %p276 = scmp.eq.s32.totalorder %s35, 1
    %p277 = por %p275, %p276
    %p278 = scmp.ne.s32.totalorder %s269, %s270
    %p279 = scmp.eq.s32.totalorder %s35, 0
    %p280 = por %p278, %p279
    %p281 = scmp.ne.s32.totalorder %s269, %s270
    %p282 = scmp.eq.s32.totalorder %s36, 1
    %p283 = por %p281, %p282
    %p285 = scmp.ne.s32.totalorder %s270, %s284
    %p286 = scmp.eq.s32.totalorder %s36, 0
    %p287 = por %p285, %p286
    %s289 = sadd.s32 %s288, 1
    %p292 = scmp.eq.s32.totalorder %s30, 1
    %p293 = scmp.ne.s32.totalorder %s288, %s290
    %p294 = scmp.eq.s32.totalorder %s30, 0
    %p295 = por %p293, %p294
    %p296 = scmp.ne.s32.totalorder %s288, %s290
    %p297 = scmp.eq.s32.totalorder %s35, 1
    %p298 = por %p296, %p297
    %p299 = scmp.ne.s32.totalorder %s290, %s291
    %p300 = scmp.eq.s32.totalorder %s35, 0
    %p301 = por %p299, %p300
    %p302 = scmp.ne.s32.totalorder %s290, %s291
    %p303 = scmp.eq.s32.totalorder %s36, 1
    %p304 = por %p302, %p303
    %p306 = scmp.ne.s32.totalorder %s291, %s305
    %p307 = scmp.eq.s32.totalorder %s36, 0
    %p308 = por %p306, %p307
    %s310 = sadd.s32 %s309, 1
    %p313 = scmp.eq.s32.totalorder %s30, 1
    %p314 = scmp.ne.s32.totalorder %s309, %s311
    %p315 = scmp.eq.s32.totalorder %s30, 0
    %p316 = por %p314, %p315
    %p317 = scmp.ne.s32.totalorder %s309, %s311
    %p318 = scmp.eq.s32.totalorder %s35, 1
    %p319 = por %p317, %p318
    %p320 = scmp.ne.s32.totalorder %s311, %s312
    %p321 = scmp.eq.s32.totalorder %s35, 0
    %p322 = por %p320, %p321
    %p323 = scmp.ne.s32.totalorder %s311, %s312
    %p324 = scmp.eq.s32.totalorder %s36, 1
    %p325 = por %p323, %p324
    %p327 = scmp.ne.s32.totalorder %s312, %s326
    %p328 = scmp.eq.s32.totalorder %s36, 0
    %p329 = por %p327, %p328
    %s331 = sadd.s32 %s330, 1
    %p334 = scmp.eq.s32.totalorder %s30, 1
    %p335 = scmp.ne.s32.totalorder %s330, %s332
    %p336 = scmp.eq.s32.totalorder %s30, 0
    %p337 = por %p335, %p336
    %p338 = scmp.ne.s32.totalorder %s330, %s332
    %p339 = scmp.eq.s32.totalorder %s35, 1
    %p340 = por %p338, %p339
    %p341 = scmp.ne.s32.totalorder %s332, %s333
    %p342 = scmp.eq.s32.totalorder %s35, 0
    %p343 = por %p341, %p342
    %p344 = scmp.ne.s32.totalorder %s332, %s333
    %p345 = scmp.eq.s32.totalorder %s36, 1
    %p346 = por %p344, %p345
    %p348 = scmp.ne.s32.totalorder %s333, %s347
    %p349 = scmp.eq.s32.totalorder %s36, 0
    %p350 = por %p348, %p349
    %s352 = sadd.s32 %s351, 1
    %p355 = scmp.eq.s32.totalorder %s30, 1
    %p356 = scmp.ne.s32.totalorder %s351, %s353
    %p357 = scmp.eq.s32.totalorder %s30, 0
    %p358 = por %p356, %p357
    %p359 = scmp.ne.s32.totalorder %s351, %s353
    %p360 = scmp.eq.s32.totalorder %s35, 1
    %p361 = por %p359, %p360
    %p362 = scmp.ne.s32.totalorder %s353, %s354
    %p363 = scmp.eq.s32.totalorder %s35, 0
    %p364 = por %p362, %p363
    %p365 = scmp.ne.s32.totalorder %s353, %s354
    %p366 = scmp.eq.s32.totalorder %s36, 1
    %p367 = por %p365, %p366
    %p369 = scmp.ne.s32.totalorder %s354, %s368
    %p370 = scmp.eq.s32.totalorder %s36, 0
    %p371 = por %p369, %p370
    %s373 = sadd.s32 %s372, 1
    %p376 = scmp.eq.s32.totalorder %s30, 1
    %p377 = scmp.ne.s32.totalorder %s372, %s374
    %p378 = scmp.eq.s32.totalorder %s30, 0
    %p379 = por %p377, %p378
    %p380 = scmp.ne.s32.totalorder %s372, %s374
    %p381 = scmp.eq.s32.totalorder %s35, 1
    %p382 = por %p380, %p381
    %p383 = scmp.ne.s32.totalorder %s374, %s375
    %p384 = scmp.eq.s32.totalorder %s35, 0
    %p385 = por %p383, %p384
    %p386 = scmp.ne.s32.totalorder %s374, %s375
    %p387 = scmp.eq.s32.totalorder %s36, 1
    %p388 = por %p386, %p387
    %p390 = scmp.ne.s32.totalorder %s375, %s389
    %p391 = scmp.eq.s32.totalorder %s36, 0
    %p392 = por %p390, %p391
    %s393 = ssub.s32 %s37, %s49
    %s394 = ssub.s32 %s38, %s45
    %s395 = sor.u32 %s393, %s394
    %p396 = scmp.eq.s32.totalorder %s395, 0
    %s398 = sadd.s32 %s397, 1
    %s399 = scalar_select %p396, %s397, %s398
    %p402 = pneg %p396
    %p403 = scmp.eq.s32.totalorder %s30, 1
    %p404 = por %p402, %p403
    %p405 = scmp.ne.s32.totalorder %s397, %s400
    %p406 = scmp.eq.s32.totalorder %s30, 0
    %p407 = por %p405, %p406
    %p408 = scmp.ne.s32.totalorder %s397, %s400
    %p409 = scmp.eq.s32.totalorder %s35, 1
    %p410 = por %p408, %p409
    %p411 = scmp.ne.s32.totalorder %s400, %s401
    %p412 = scmp.eq.s32.totalorder %s35, 0
    %p413 = por %p411, %p412
    %p414 = scmp.ne.s32.totalorder %s400, %s401
    %p415 = scmp.eq.s32.totalorder %s36, 1
    %p416 = por %p414, %p415
    %p418 = scmp.ne.s32.totalorder %s401, %s417
    %p419 = scmp.eq.s32.totalorder %s36, 0
    %p420 = por %p418, %p419
    %s421 = ssub.s32 %s37, %s49
    %s422 = ssub.s32 %s38, %s45
    %s423 = sor.u32 %s421, %s422
    %p424 = scmp.eq.s32.totalorder %s423, 0
    %s426 = sadd.s32 %s425, 1
    %s427 = scalar_select %p424, %s425, %s426
    %p430 = pneg %p424
    %p431 = scmp.eq.s32.totalorder %s30, 1
    %p432 = por %p430, %p431
    %p433 = scmp.ne.s32.totalorder %s425, %s428
    %p434 = scmp.eq.s32.totalorder %s30, 0
    %p435 = por %p433, %p434
    %p436 = scmp.ne.s32.totalorder %s425, %s428
    %p437 = scmp.eq.s32.totalorder %s35, 1
    %p438 = por %p436, %p437
    %p439 = scmp.ne.s32.totalorder %s428, %s429
    %p440 = scmp.eq.s32.totalorder %s35, 0
    %p441 = por %p439, %p440
    %p442 = scmp.ne.s32.totalorder %s428, %s429
    %p443 = scmp.eq.s32.totalorder %s36, 1
    %p444 = por %p442, %p443
    %p446 = scmp.ne.s32.totalorder %s429, %s445
    %p447 = scmp.eq.s32.totalorder %s36, 0
    %p448 = por %p446, %p447
    %p449 = scmp.le.s32.totalorder 1, %s30
    %p450 = scmp.lt.s32.totalorder %s30, 3
    %p451 = pnand %p449, %p450
    %p452 = pneg %p451
    // Predicated region
    $region9: #{vector_quantizer_forward.1} parent=5 // pred_check
      _
    $region10: #{vector_quantizer_forward.1} parent=5 // pred_check_branch
      %454 = sbr.rel (%p451) target = $region12
    $region11: #{vector_quantizer_forward.1} parent=5 // pred_region
      %s455 = ssub.s32 %s30, 1
      // Predicated region
      $region13: #{vector_quantizer_forward.1} parent=11 // pred_check
        %p456 = pneg %p175
      $region14: #{vector_quantizer_forward.1} parent=11 // pred_check_branch
        %458 = sbr.rel (%p456) target = $region16
      $region15: #{vector_quantizer_forward.1} parent=11 // pred_region
        _
      $region16: #{vector_quantizer_forward.1} parent=11 // pred_fallthru
        _
      // Predicated region
      $region17: #{vector_quantizer_forward.1} parent=11 // pred_check
        %p459 = pneg %p196
      $region18: #{vector_quantizer_forward.1} parent=11 // pred_check_branch
        %461 = sbr.rel (%p459) target = $region20
      $region19: #{vector_quantizer_forward.1} parent=11 // pred_region
        _
      $region20: #{vector_quantizer_forward.1} parent=11 // pred_fallthru
        _
      // Predicated region
      $region21: #{vector_quantizer_forward.1} parent=11 // pred_check
        %p462 = pneg %p217
      $region22: #{vector_quantizer_forward.1} parent=11 // pred_check_branch
        %464 = sbr.rel (%p462) target = $region24
      $region23: #{vector_quantizer_forward.1} parent=11 // pred_region
        _
      $region24: #{vector_quantizer_forward.1} parent=11 // pred_fallthru
        _
      // Predicated region
      $region25: #{vector_quantizer_forward.1} parent=11 // pred_check
        %p465 = pneg %p238
      $region26: #{vector_quantizer_forward.1} parent=11 // pred_check_branch
        %467 = sbr.rel (%p465) target = $region28
      $region27: #{vector_quantizer_forward.1} parent=11 // pred_region
        _
      $region28: #{vector_quantizer_forward.1} parent=11 // pred_fallthru
        _
      // Predicated region
      $region29: #{vector_quantizer_forward.1} parent=11 // pred_check
        %p468 = pneg %p259
      $region30: #{vector_quantizer_forward.1} parent=11 // pred_check_branch
        %470 = sbr.rel (%p468) target = $region32
      $region31: #{vector_quantizer_forward.1} parent=11 // pred_region
        _
      $region32: #{vector_quantizer_forward.1} parent=11 // pred_fallthru
        _
      // Predicated region
      $region33: #{vector_quantizer_forward.1} parent=11 // pred_check
        %p471 = pneg %p280
      $region34: #{vector_quantizer_forward.1} parent=11 // pred_check_branch
        %473 = sbr.rel (%p471) target = $region36
      $region35: #{vector_quantizer_forward.1} parent=11 // pred_region
        _
      $region36: #{vector_quantizer_forward.1} parent=11 // pred_fallthru
        _
      // Predicated region
      $region37: #{vector_quantizer_forward.1} parent=11 // pred_check
        %p474 = pneg %p301
      $region38: #{vector_quantizer_forward.1} parent=11 // pred_check_branch
        %476 = sbr.rel (%p474) target = $region40
      $region39: #{vector_quantizer_forward.1} parent=11 // pred_region
        _
      $region40: #{vector_quantizer_forward.1} parent=11 // pred_fallthru
        _
      // Predicated region
      $region41: #{vector_quantizer_forward.1} parent=11 // pred_check
        %p477 = pneg %p322
      $region42: #{vector_quantizer_forward.1} parent=11 // pred_check_branch
        %479 = sbr.rel (%p477) target = $region44
      $region43: #{vector_quantizer_forward.1} parent=11 // pred_region
        _
      $region44: #{vector_quantizer_forward.1} parent=11 // pred_fallthru
        _
      // Predicated region
      $region45: #{vector_quantizer_forward.1} parent=11 // pred_check
        %p480 = pneg %p343
      $region46: #{vector_quantizer_forward.1} parent=11 // pred_check_branch
        %482 = sbr.rel (%p480) target = $region48
      $region47: #{vector_quantizer_forward.1} parent=11 // pred_region
        _
      $region48: #{vector_quantizer_forward.1} parent=11 // pred_fallthru
        _
      // Predicated region
      $region49: #{vector_quantizer_forward.1} parent=11 // pred_check
        %p483 = pneg %p364
      $region50: #{vector_quantizer_forward.1} parent=11 // pred_check_branch
        %485 = sbr.rel (%p483) target = $region52
      $region51: #{vector_quantizer_forward.1} parent=11 // pred_region
        _
      $region52: #{vector_quantizer_forward.1} parent=11 // pred_fallthru
        _
      // Predicated region
      $region53: #{vector_quantizer_forward.1} parent=11 // pred_check
        %p486 = pneg %p385
      $region54: #{vector_quantizer_forward.1} parent=11 // pred_check_branch
        %488 = sbr.rel (%p486) target = $region56
      $region55: #{vector_quantizer_forward.1} parent=11 // pred_region
        _
      $region56: #{vector_quantizer_forward.1} parent=11 // pred_fallthru
        _
    $region12: #{vector_quantizer_forward.1} parent=5 // pred_fallthru
      _
    %p489 = scmp.lt.s32.totalorder %s30, 2
    // Predicated region
    $region57: #{vector_quantizer_forward.1} parent=5 // pred_check
      %p490 = pneg %p489
    $region58: #{vector_quantizer_forward.1} parent=5 // pred_check_branch
      %492 = sbr.rel (%p490) target = $region60
    $region59: #{vector_quantizer_forward.1} parent=5 // pred_region
      // Predicated region
      $region61: #{vector_quantizer_forward.1} parent=59 // pred_check
        %p493 = pneg %p64
      $region62: #{vector_quantizer_forward.1} parent=59 // pred_check_branch
        %495 = sbr.rel (%p493) target = $region64
      $region63: #{vector_quantizer_forward.1} parent=59 // pred_region
        %s496 = smul.u32 2, %s38
        %p497 = scmp.lt.s32.totalorder %s37, 1
        %s498 = scalar_select %p497, %s37, 1
        %p499 = scmp.lt.s32.totalorder %s496, 1
        %s500 = scalar_select %p499, %s496, 1
        %s501 = smul.addr %s498, 8
        %s502 = sadd.s32 %s500, %s501
        %s503 = smul.addr %s502, 8
        %s504 = scalar_lea.vmem %s1, %s503
        %s505 = smul.u32 2, %s38
      $region64: #{vector_quantizer_forward.1} parent=59 // pred_fallthru
        _
      // Predicated region
      $region65: #{vector_quantizer_forward.1} parent=59 // pred_check
        %p506 = pneg %p92
      $region66: #{vector_quantizer_forward.1} parent=59 // pred_check_branch
        %508 = sbr.rel (%p506) target = $region68
      $region67: #{vector_quantizer_forward.1} parent=59 // pred_region
        %s509 = sld [smem:[#allocation3 + %s37]]
        %p510 = scmp.lt.s32.totalorder %s509, 2
        %s511 = scalar_select %p510, %s509, 2
        %s512 = smul.addr %s511, 2
        %s513 = smul.addr %s512, 8
        %s514 = scalar_lea.vmem %s2, %s513
        %s515 = sld [smem:[#allocation3 + %s37]]
      $region68: #{vector_quantizer_forward.1} parent=59 // pred_fallthru
        _
      // Predicated region
      $region69: #{vector_quantizer_forward.1} parent=59 // pred_check
        %p516 = pneg %p120
      $region70: #{vector_quantizer_forward.1} parent=59 // pred_check_branch
        %518 = sbr.rel (%p516) target = $region72
      $region71: #{vector_quantizer_forward.1} parent=59 // pred_region
        %s519 = sld [smem:[#allocation3 + %s37]]
        %p520 = scmp.lt.s32.totalorder %s519, 2
        %s521 = scalar_select %p520, %s519, 2
        %s522 = smul.addr %s521, 2
        %s523 = smul.addr %s522, 8
        %s524 = scalar_lea.vmem %s3, %s523
        %s525 = sld [smem:[#allocation3 + %s37]]
      $region72: #{vector_quantizer_forward.1} parent=59 // pred_fallthru
        _
      // Predicated region
      $region73: #{vector_quantizer_forward.1} parent=59 // pred_check
        %p526 = pneg %p148
      $region74: #{vector_quantizer_forward.1} parent=59 // pred_check_branch
        %528 = sbr.rel (%p526) target = $region76
      $region75: #{vector_quantizer_forward.1} parent=59 // pred_region
        %s529 = sld [smem:[#allocation3 + %s37]]
        %p530 = scmp.lt.s32.totalorder %s529, 2
        %s531 = scalar_select %p530, %s529, 2
        %s532 = smul.addr %s531, 4
        %s533 = smul.addr %s532, 8
        %s534 = scalar_lea.vmem %s4, %s533
        %s535 = sld [smem:[#allocation3 + %s37]]
      $region76: #{vector_quantizer_forward.1} parent=59 // pred_fallthru
        _
    $region60: #{vector_quantizer_forward.1} parent=5 // pred_fallthru
      _
    %p536 = scmp.le.s32.totalorder 1, %s30
    %p537 = scmp.lt.s32.totalorder %s30, 3
    %p538 = pnand %p536, %p537
    %p539 = pneg %p538
    // Predicated region
    $region77: #{vector_quantizer_forward.1} parent=5 // pred_check
      _
    $region78: #{vector_quantizer_forward.1} parent=5 // pred_check_branch
      %541 = sbr.rel (%p538) target = $region80
    $region79: #{vector_quantizer_forward.1} parent=5 // pred_region
      %s542 = ssub.s32 %s30, 1
      %s543 = smul.u32 2, %s40
      %p544 = scmp.lt.s32.totalorder %s39, 1
      %s545 = scalar_select %p544, %s39, 1
      %p546 = scmp.lt.s32.totalorder %s543, 1
      %s547 = scalar_select %p546, %s543, 1
      %s548 = smul.addr %s545, 8
      %s549 = sadd.s32 %s547, %s548
      %s550 = smul.addr %s549, 8
      %s551 = scalar_lea.vmem %s1, %s550
      %p552 = pneg %p70
      %p553 = pneg %p67
      %s554 = sld [smem:[#allocation3 + %s39]]
      %p555 = scmp.lt.s32.totalorder %s554, 2
      %s556 = scalar_select %p555, %s554, 2
      %s557 = smul.addr %s556, 2
      %s558 = smul.addr %s557, 8
      %s559 = scalar_lea.vmem %s2, %s558
      %p560 = pneg %p98
      %p561 = pneg %p95
      %s562 = sld [smem:[#allocation3 + %s39]]
      %p563 = scmp.lt.s32.totalorder %s562, 2
      %s564 = scalar_select %p563, %s562, 2
      %s565 = smul.addr %s564, 2
      %s566 = smul.addr %s565, 8
      %s567 = scalar_lea.vmem %s3, %s566
      %p568 = pneg %p126
      %p569 = pneg %p123
      %s570 = sld [smem:[#allocation3 + %s39]]
      %p571 = scmp.lt.s32.totalorder %s570, 2
      %s572 = scalar_select %p571, %s570, 2
      %s573 = smul.addr %s572, 4
      %s574 = smul.addr %s573, 8
      %s575 = scalar_lea.vmem %s4, %s574
      %p576 = pneg %p154
      %p577 = pneg %p151
      %p578 = pneg %p175
      %p579 = pneg %p172
      %p580 = pneg %p196
      %p581 = pneg %p193
      %p582 = pneg %p217
      %p583 = pneg %p214
      %p584 = pneg %p238
      %p585 = pneg %p235
      %p586 = pneg %p259
      %p587 = pneg %p256
      %p588 = pneg %p280
      %p589 = pneg %p277
      %p590 = pneg %p301
      %p591 = pneg %p298
      %p592 = pneg %p322
      %p593 = pneg %p319
      %p594 = pneg %p343
      %p595 = pneg %p340
      %p596 = pneg %p364
      %p597 = pneg %p361
      %p598 = pneg %p385
      %p599 = pneg %p382
      %p600 = pneg %p413
      %p601 = pneg %p410
      %s602 = smul.u32 2, %s40
      %p603 = scmp.lt.s32.totalorder %s39, 1
      %s604 = scalar_select %p603, %s39, 1
      %p605 = scmp.lt.s32.totalorder %s602, 1
      %s606 = scalar_select %p605, %s602, 1
      %s607 = smul.addr %s604, 8
      %s608 = sadd.s32 %s606, %s607
      %s609 = smul.addr %s608, 8
      %s610 = scalar_lea.vmem %s16, %s609
      %p611 = pneg %p441
      %p612 = pneg %p438
      %s613 = smul.u32 2, %s40
      %p614 = scmp.lt.s32.totalorder %s39, 1
      %s615 = scalar_select %p614, %s39, 1
      %p616 = scmp.lt.s32.totalorder %s613, 1
      %s617 = scalar_select %p616, %s613, 1
      %s618 = smul.addr %s615, 2
      %s619 = sadd.s32 %s617, %s618
      %s620 = scalar_lea.vmem %s17, %s619
      %s621 = smul.u32 2, %s40
      %p622 = scmp.lt.s32.totalorder %s39, 1
      %s623 = scalar_select %p622, %s39, 1
      %p624 = scmp.lt.s32.totalorder %s621, 1
      %s625 = scalar_select %p624, %s621, 1
      %s626 = smul.addr %s623, 8
      %s627 = sadd.s32 %s625, %s626
      %s628 = smul.addr %s627, 8
      %s629 = scalar_lea.vmem %s1, %s628
      %s630 = smul.u32 2, %s40
      %s631 = sld [smem:[#allocation3 + %s39]]
      %p632 = scmp.lt.s32.totalorder %s631, 2
      %s633 = scalar_select %p632, %s631, 2
      %s634 = smul.addr %s633, 2
      %s635 = smul.addr %s634, 8
      %s636 = scalar_lea.vmem %s2, %s635
      %s637 = sld [smem:[#allocation3 + %s39]]
      %s638 = sld [smem:[#allocation3 + %s39]]
      %p639 = scmp.lt.s32.totalorder %s638, 2
      %s640 = scalar_select %p639, %s638, 2
      %s641 = smul.addr %s640, 2
      %s642 = smul.addr %s641, 8
      %s643 = scalar_lea.vmem %s3, %s642
      %s644 = sld [smem:[#allocation3 + %s39]]
      %s645 = sld [smem:[#allocation3 + %s39]]
      %p646 = scmp.lt.s32.totalorder %s645, 2
      %s647 = scalar_select %p646, %s645, 2
      %s648 = smul.addr %s647, 4
      %s649 = smul.addr %s648, 8
      %s650 = scalar_lea.vmem %s4, %s649
      %s651 = sld [smem:[#allocation3 + %s39]]
      %s652 = smul.u32 2, %s40
      %p653 = scmp.lt.s32.totalorder %s39, 1
      %s654 = scalar_select %p653, %s39, 1
      %p655 = scmp.lt.s32.totalorder %s652, 1
      %s656 = scalar_select %p655, %s652, 1
      %s657 = smul.addr %s654, 8
      %s658 = sadd.s32 %s656, %s657
      %s659 = smul.addr %s658, 8
      %s660 = scalar_lea.vmem %s16, %s659
      %s661 = smul.u32 2, %s40
      %s662 = smul.u32 2, %s40
      %p663 = scmp.lt.s32.totalorder %s39, 1
      %s664 = scalar_select %p663, %s39, 1
      %p665 = scmp.lt.s32.totalorder %s662, 1
      %s666 = scalar_select %p665, %s662, 1
      %s667 = smul.addr %s664, 2
      %s668 = sadd.s32 %s666, %s667
      %s669 = scalar_lea.vmem %s17, %s668
      %s670 = smul.u32 2, %s40
      %v671 = vld [vmem:[%s629] sm:$0xff]
      %v672 = vld [vmem:[%s629 + $0x8] sm:$0xff]
      %v673 = vld [vmem:[%s629 + $0x10] sm:$0xff]
      %v674 = vld [vmem:[%s629 + $0x18] sm:$0xff]
      %v675 = vld [vmem:[%s629 + $0x20] sm:$0xff]
      %v676 = vld [vmem:[%s629 + $0x28] sm:$0xff]
      %v677 = vld [vmem:[%s629 + $0x30] sm:$0xff]
      %v678 = vld [vmem:[%s629 + $0x38] sm:$0xff]
      %v679 = vld [vmem:[%s5] sm:$0xff]
      %v680 = vld [vmem:[%s5 + $0x8] sm:$0xff]
      %v681 = vld [vmem:[%s5 + $0x10] sm:$0xff]
      %v682 = vld [vmem:[%s5 + $0x18] sm:$0xff]
      %v683 = vld [vmem:[%s6] sm:$0xff]
      %v684 = vld [vmem:[%s6 + $0x8] sm:$0xff]
      %v685 = vld [vmem:[%s6 + $0x10] sm:$0xff]
      %v686 = vld [vmem:[%s6 + $0x18] sm:$0xff]
      %688 = vset.pattern.permute.xlu0 0
      %689 = vperm.xlu0 %688, %v683
      %v690 = vpop.permute.xlu0 %689
      %693 = vset.pattern.permute.xlu0 0
      %694 = vperm.xlu0 %693, %v684
      %v695 = vpop.permute.xlu0 %694
      %698 = vset.pattern.permute.xlu0 0
      %699 = vperm.xlu0 %698, %v685
      %v700 = vpop.permute.xlu0 %699
      %703 = vset.pattern.permute.xlu0 0
      %704 = vperm.xlu0 %703, %v686
      %v705 = vpop.permute.xlu0 %704
      %vm707 = vcmask 261120
      %v709 = vsel %vm707, %v679, 0
      %v712 = vsel %vm707, %v680, 0
      %v715 = vsel %vm707, %v681, 0
      %v718 = vsel %vm707, %v682, 0
      %720 = vmatprep.subr.mxu0 %v672
      %721 = vmatpush1.msra.mxu0 %v671
      %722 = vmatprep.subr.mxu0 %v674
      %723 = vmatpush1.msra.mxu0 %v673
      %724 = vmatprep.subr.mxu0 %v676
      %725 = vmatpush1.msra.mxu0 %v675
      %726 = vmatprep.subr.mxu0 %v678
      %727 = vmatpush1.msra.mxu0 %v677
      %728 = vmatprep.subr.mxu0 0.0
      %729 = vmatpush1.msra.mxu0 0.0
      %730 = vmatprep.subr.mxu0 0.0
      %731 = vmatpush1.msra.mxu0 0.0
      %732 = vmatprep.subr.mxu0 0.0
      %733 = vmatpush1.msra.mxu0 0.0
      %734 = vmatprep.subr.mxu0 0.0
      %735 = vmatpush1.msra.mxu0 0.0
      %736 = vmatprep.subr.mxu0 0.0
      %737 = vmatpush1.msra.mxu0 0.0
      %738 = vmatprep.subr.mxu0 0.0
      %739 = vmatpush1.msra.mxu0 0.0
      %740 = vmatprep.subr.mxu0 0.0
      %741 = vmatpush1.msra.mxu0 0.0
      %742 = vmatprep.subr.mxu0 0.0
      %743 = vmatpush1.msra.mxu0 0.0
      %744 = vmatprep.subr.mxu0 0.0
      %745 = vmatpush1.msra.mxu0 0.0
      %746 = vmatprep.subr.mxu0 0.0
      %747 = vmatpush1.msra.mxu0 0.0
      %748 = vmatprep.subr.mxu0 0.0
      %749 = vmatpush1.msra.mxu0 0.0
      %750 = vmatprep.subr.mxu0 0.0
      %751 = vmatpush1.msra.mxu0 0.0
      %752 = vmatprep.subr.mxu0 0.0
      %753 = vmatpush1.msra.mxu0 0.0
      %754 = vmatprep.subr.mxu0 0.0
      %755 = vmatpush1.msra.mxu0 0.0
      %756 = vmatprep.subr.mxu0 0.0
      %757 = vmatpush1.msra.mxu0 0.0
      %758 = vmatprep.subr.mxu0 0.0
      %759 = vmatpush1.msra.mxu0 0.0
      %760 = vmatprep.subr.mxu0 0.0
      %761 = vmatpush1.msra.mxu0 0.0
      %762 = vmatprep.subr.mxu0 0.0
      %763 = vmatpush1.msra.mxu0 0.0
      %764 = vmatprep.subr.mxu0 0.0
      %765 = vmatpush1.msra.mxu0 0.0
      %766 = vmatprep.subr.mxu0 0.0
      %767 = vmatpush1.msra.mxu0 0.0
      %768 = vmatprep.subr.mxu0 0.0
      %769 = vmatpush1.msra.mxu0 0.0
      %770 = vmatprep.subr.mxu0 0.0
      %771 = vmatpush1.msra.mxu0 0.0
      %772 = vmatprep.subr.mxu0 0.0
      %773 = vmatpush1.msra.mxu0 0.0
      %774 = vmatprep.subr.mxu0 0.0
      %775 = vmatpush1.msra.mxu0 0.0
      %776 = vmatprep.subr.mxu0 0.0
      %777 = vmatpush1.msra.mxu0 0.0
      %778 = vmatprep.subr.mxu0 0.0
      %779 = vmatpush1.msra.mxu0 0.0
      %780 = vmatprep.subr.mxu0 0.0
      %781 = vmatpush1.msra.mxu0 0.0
      %782 = vmatprep.subr.mxu0 0.0
      %783 = vmatpush1.msra.mxu0 0.0
      %784 = vmatprep.mubr.f32.mxu0 0.0
      %785 = vmatmul.mubr.f32.gmra.mrb[0].mxu0 %v709
      %v786 = vpop.f32.mrb[0].mxu0
      %v787 = vadd.f32 %v690, %v786
      %v788 = vpop.f32.mrb[0].mxu0
      %v789 = vadd.f32 %v690, %v788
      %790 = vmatprep.mubr.f32.mxu0 0.0
      %791 = vmatmul.mubr.f32.gmra.mrb[0].mxu0 %v712
      %v792 = vpop.f32.mrb[0].mxu0
      %v793 = vadd.f32 %v695, %v792
      %v794 = vpop.f32.mrb[0].mxu0
      %v795 = vadd.f32 %v695, %v794
      %796 = vmatprep.mubr.f32.mxu0 0.0
      %797 = vmatmul.mubr.f32.gmra.mrb[0].mxu0 %v715
      %v798 = vpop.f32.mrb[0].mxu0
      %v799 = vadd.f32 %v700, %v798
      %v800 = vpop.f32.mrb[0].mxu0
      %v801 = vadd.f32 %v700, %v800
      %802 = vmatprep.mubr.f32.mxu0 0.0
      %803 = vmatmul.mubr.f32.gmra.mrb[0].mxu0 %v718
      %v804 = vpop.f32.mrb[0].mxu0
      %v805 = vadd.f32 %v705, %v804
      %v806 = vpop.f32.mrb[0].mxu0
      %v807 = vadd.f32 %v705, %v806
      %808 = vdwg.mxu0
      %v809 = vmax.f32 %v787, 0.0
      %v810 = vmax.f32 %v789, 0.0
      %v811 = vmax.f32 %v793, 0.0
      %v812 = vmax.f32 %v795, 0.0
      %v813 = vmax.f32 %v799, 0.0
      %v814 = vmax.f32 %v801, 0.0
      %v815 = vmax.f32 %v805, 0.0
      %v816 = vmax.f32 %v807, 0.0
      %v817 = vld [vmem:[%s7] sm:$0xff]
      %v818 = vld [vmem:[%s8] sm:$0xff]
      %820 = vset.pattern.permute.xlu0 0
      %821 = vperm.xlu0 %820, %v818
      %v822 = vpop.permute.xlu0 %821
      %v825 = vsel %vm707, %v817, 0
      %827 = vmatprep.subr.mxu0 %v810
      %828 = vmatpush1.msra.mxu0 %v809
      %829 = vmatprep.subr.mxu0 %v812
      %830 = vmatpush1.msra.mxu0 %v811
      %831 = vmatprep.subr.mxu0 %v814
      %832 = vmatpush1.msra.mxu0 %v813
      %833 = vmatprep.subr.mxu0 %v816
      %834 = vmatpush1.msra.mxu0 %v815
      %835 = vmatprep.subr.mxu0 0.0
      %836 = vmatpush1.msra.mxu0 0.0
      %837 = vmatprep.subr.mxu0 0.0
      %838 = vmatpush1.msra.mxu0 0.0
      %839 = vmatprep.subr.mxu0 0.0
      %840 = vmatpush1.msra.mxu0 0.0
      %841 = vmatprep.subr.mxu0 0.0
      %842 = vmatpush1.msra.mxu0 0.0
      %843 = vmatprep.subr.mxu0 0.0
      %844 = vmatpush1.msra.mxu0 0.0
      %845 = vmatprep.subr.mxu0 0.0
      %846 = vmatpush1.msra.mxu0 0.0
      %847 = vmatprep.subr.mxu0 0.0
      %848 = vmatpush1.msra.mxu0 0.0
      %849 = vmatprep.subr.mxu0 0.0
      %850 = vmatpush1.msra.mxu0 0.0
      %851 = vmatprep.subr.mxu0 0.0
      %852 = vmatpush1.msra.mxu0 0.0
      %853 = vmatprep.subr.mxu0 0.0
      %854 = vmatpush1.msra.mxu0 0.0
      %855 = vmatprep.subr.mxu0 0.0
      %856 = vmatpush1.msra.mxu0 0.0
      %857 = vmatprep.subr.mxu0 0.0
      %858 = vmatpush1.msra.mxu0 0.0
      %859 = vmatprep.subr.mxu0 0.0
      %860 = vmatpush1.msra.mxu0 0.0
      %861 = vmatprep.subr.mxu0 0.0
      %862 = vmatpush1.msra.mxu0 0.0
      %863 = vmatprep.subr.mxu0 0.0
      %864 = vmatpush1.msra.mxu0 0.0
      %865 = vmatprep.subr.mxu0 0.0
      %866 = vmatpush1.msra.mxu0 0.0
      %867 = vmatprep.subr.mxu0 0.0
      %868 = vmatpush1.msra.mxu0 0.0
      %869 = vmatprep.subr.mxu0 0.0
      %870 = vmatpush1.msra.mxu0 0.0
      %871 = vmatprep.subr.mxu0 0.0
      %872 = vmatpush1.msra.mxu0 0.0
      %873 = vmatprep.subr.mxu0 0.0
      %874 = vmatpush1.msra.mxu0 0.0
      %875 = vmatprep.subr.mxu0 0.0
      %876 = vmatpush1.msra.mxu0 0.0
      %877 = vmatprep.subr.mxu0 0.0
      %878 = vmatpush1.msra.mxu0 0.0
      %879 = vmatprep.subr.mxu0 0.0
      %880 = vmatpush1.msra.mxu0 0.0
      %881 = vmatprep.subr.mxu0 0.0
      %882 = vmatpush1.msra.mxu0 0.0
      %883 = vmatprep.subr.mxu0 0.0
      %884 = vmatpush1.msra.mxu0 0.0
      %885 = vmatprep.subr.mxu0 0.0
      %886 = vmatpush1.msra.mxu0 0.0
      %887 = vmatprep.subr.mxu0 0.0
      %888 = vmatpush1.msra.mxu0 0.0
      %889 = vmatprep.subr.mxu0 0.0
      %890 = vmatpush1.msra.mxu0 0.0
      %891 = vmatprep.mubr.f32.mxu0 0.0
      %892 = vmatmul.mubr.f32.gmra.mrb[0].mxu0 %v825
      %v893 = vpop.f32.mrb[0].mxu0
      %v894 = vadd.f32 %v822, %v893
      %v895 = vpop.f32.mrb[0].mxu0
      %v896 = vadd.f32 %v822, %v895
      %897 = vdwg.mxu0
      %v898 = vrot.slane %v894, 4
      %v899 = vadd.f32 %v894, %v898
      %v900 = vrot.slane %v899, 2
      %v901 = vadd.f32 %v899, %v900
      %v902 = vrot.slane %v901, 1
      %v903 = vadd.f32 %v901, %v902
      %v904 = vrot.slane %v896, 4
      %v905 = vadd.f32 %v896, %v904
      %v906 = vrot.slane %v905, 2
      %v907 = vadd.f32 %v905, %v906
      %v908 = vrot.slane %v907, 1
      %v909 = vadd.f32 %v907, %v908
      %v910 = vrcp.pop 8.0
      %v911 = vmul.f32 %v903, %v910
      %v912 = vmul.f32 %v909, %v910
      %v913 = vsub.f32 %v894, %v911
      %v914 = vsub.f32 %v896, %v912
      %v915 = vmul.f32 %v913, %v913
      %v916 = vmul.f32 %v914, %v914
      %v917 = vrot.slane %v915, 4
      %v918 = vadd.f32 %v915, %v917
      %v919 = vrot.slane %v918, 2
      %v920 = vadd.f32 %v918, %v919
      %v921 = vrot.slane %v920, 1
      %v922 = vadd.f32 %v920, %v921
      %v923 = vrot.slane %v916, 4
      %v924 = vadd.f32 %v916, %v923
      %v925 = vrot.slane %v924, 2
      %v926 = vadd.f32 %v924, %v925
      %v927 = vrot.slane %v926, 1
      %v928 = vadd.f32 %v926, %v927
      %v929 = vmul.f32 %v922, %v910
      %v930 = vmul.f32 %v928, %v910
      %v931 = vadd.f32 %v929, 1e-05
      %v932 = vadd.f32 %v930, 1e-05
      %v933 = vrsqrt.pop %v931
      %v934 = vrsqrt.pop %v932
      %v935 = vmul.f32 %v913, %v933
      %v936 = vmul.f32 %v914, %v934
      %v937 = vld [vmem:[%s9] sm:$0xff]
      %939 = vset.pattern.permute.xlu0 0
      %940 = vperm.xlu0 %939, %v937
      %v941 = vpop.permute.xlu0 %940
      %v943 = vmul.f32 %v935, %v941
      %v944 = vmul.f32 %v936, %v941
      %v945 = vld [vmem:[%s10] sm:$0xff]
      %947 = vset.pattern.permute.xlu0 0
      %948 = vperm.xlu0 %947, %v945
      %v949 = vpop.permute.xlu0 %948
      %v951 = vadd.f32 %v943, %v949
      %v952 = vadd.f32 %v944, %v949
      %v953 = vld [vmem:[%s636] sm:$0xff]
      %v954 = vld [vmem:[%s636 + $0x8] sm:$0xff]
      %v955 = vld [vmem:[%s643] sm:$0xff]
      %v956 = vld [vmem:[%s643 + $0x8] sm:$0xff]
      %vm957 = vcmask 64512
      %v959 = vsel %vm957, %v953, 0
      %v962 = vsel %vm957, %v954, 0
      %964 = vmatprep.subr.mxu0 %v952
      %965 = vmatpush1.msra.mxu0 %v951
      %966 = vmatprep.subr.mxu0 0.0
      %967 = vmatpush1.msra.mxu0 0.0
      %968 = vmatprep.subr.mxu0 0.0
      %969 = vmatpush1.msra.mxu0 0.0
      %970 = vmatprep.subr.mxu0 0.0
      %971 = vmatpush1.msra.mxu0 0.0
      %972 = vmatprep.subr.mxu0 0.0
      %973 = vmatpush1.msra.mxu0 0.0
      %974 = vmatprep.subr.mxu0 0.0
      %975 = vmatpush1.msra.mxu0 0.0
      %976 = vmatprep.subr.mxu0 0.0
      %977 = vmatpush1.msra.mxu0 0.0
      %978 = vmatprep.subr.mxu0 0.0
      %979 = vmatpush1.msra.mxu0 0.0
      %980 = vmatprep.subr.mxu0 0.0
      %981 = vmatpush1.msra.mxu0 0.0
      %982 = vmatprep.subr.mxu0 0.0
      %983 = vmatpush1.msra.mxu0 0.0
      %984 = vmatprep.subr.mxu0 0.0
      %985 = vmatpush1.msra.mxu0 0.0
      %986 = vmatprep.subr.mxu0 0.0
      %987 = vmatpush1.msra.mxu0 0.0
      %988 = vmatprep.subr.mxu0 0.0
      %989 = vmatpush1.msra.mxu0 0.0
      %990 = vmatprep.subr.mxu0 0.0
      %991 = vmatpush1.msra.mxu0 0.0
      %992 = vmatprep.subr.mxu0 0.0
      %993 = vmatpush1.msra.mxu0 0.0
      %994 = vmatprep.subr.mxu0 0.0
      %995 = vmatpush1.msra.mxu0 0.0
      %996 = vmatprep.subr.mxu0 0.0
      %997 = vmatpush1.msra.mxu0 0.0
      %998 = vmatprep.subr.mxu0 0.0
      %999 = vmatpush1.msra.mxu0 0.0
      %1000 = vmatprep.subr.mxu0 0.0
      %1001 = vmatpush1.msra.mxu0 0.0
      %1002 = vmatprep.subr.mxu0 0.0
      %1003 = vmatpush1.msra.mxu0 0.0
      %1004 = vmatprep.subr.mxu0 0.0
      %1005 = vmatpush1.msra.mxu0 0.0
      %1006 = vmatprep.subr.mxu0 0.0
      %1007 = vmatpush1.msra.mxu0 0.0
      %1008 = vmatprep.subr.mxu0 0.0
      %1009 = vmatpush1.msra.mxu0 0.0
      %1010 = vmatprep.subr.mxu0 0.0
      %1011 = vmatpush1.msra.mxu0 0.0
      %1012 = vmatprep.subr.mxu0 0.0
      %1013 = vmatpush1.msra.mxu0 0.0
      %1014 = vmatprep.subr.mxu0 0.0
      %1015 = vmatpush1.msra.mxu0 0.0
      %1016 = vmatprep.subr.mxu0 0.0
      %1017 = vmatpush1.msra.mxu0 0.0
      %1018 = vmatprep.subr.mxu0 0.0
      %1019 = vmatpush1.msra.mxu0 0.0
      %1020 = vmatprep.subr.mxu0 0.0
      %1021 = vmatpush1.msra.mxu0 0.0
      %1022 = vmatprep.subr.mxu0 0.0
      %1023 = vmatpush1.msra.mxu0 0.0
      %1024 = vmatprep.subr.mxu0 0.0
      %1025 = vmatpush1.msra.mxu0 0.0
      %1026 = vmatprep.subr.mxu0 0.0
      %1027 = vmatpush1.msra.mxu0 0.0
      %1028 = vmatprep.mubr.f32.mxu0 0.0
      %1029 = vmatmul.mubr.f32.gmra.mrb[0].mxu0 %v959
      %v1030 = vpop.f32.mrb[0].mxu0
      %v1031 = vadd.f32 0.0, %v1030
      %v1032 = vpop.f32.mrb[0].mxu0
      %v1033 = vadd.f32 0.0, %v1032
      %1034 = vmatprep.mubr.f32.mxu0 0.0
      %1035 = vmatmul.mubr.f32.gmra.mrb[0].mxu0 %v962
      %v1036 = vpop.f32.mrb[0].mxu0
      %v1037 = vadd.f32 0.0, %v1036
      %v1038 = vpop.f32.mrb[0].mxu0
      %v1039 = vadd.f32 0.0, %v1038
      %1040 = vdwg.mxu0
      %v1041 = vmul.f32 %v1031, 2.0
      %v1042 = vmul.f32 %v1033, 2.0
      %v1043 = vmul.f32 %v1037, 2.0
      %v1044 = vmul.f32 %v1039, 2.0
      %1046 = vset.pattern.permute.xlu0 0
      %1047 = vperm.xlu0 %1046, %v955
      %v1048 = vpop.permute.xlu0 %1047
      %1051 = vset.pattern.permute.xlu0 0
      %1052 = vperm.xlu0 %1051, %v956
      %v1053 = vpop.permute.xlu0 %1052
      %v1055 = vsub.f32 %v1048, %v1041
      %v1056 = vsub.f32 %v1048, %v1042
      %v1057 = vsub.f32 %v1053, %v1043
      %v1058 = vsub.f32 %v1053, %v1044
      %v1059 = vmin.f32 %v1055, %v1057
      %v1060 = vrot.slane %v1059, 4
      %v1061 = vmin.f32 %v1059, %v1060
      %v1062 = vrot.slane %v1061, 2
      %v1063 = vmin.f32 %v1061, %v1062
      %v1064 = vrot.slane %v1063, 1
      %v1065 = vmin.f32 %v1063, %v1064
      %v1066 = vmin.f32 %v1056, %v1058
      %v1067 = vrot.slane %v1066, 4
      %v1068 = vmin.f32 %v1066, %v1067
      %v1069 = vrot.slane %v1068, 2
      %v1070 = vmin.f32 %v1068, %v1069
      %v1071 = vrot.slane %v1070, 1
      %v1072 = vmin.f32 %v1070, %v1071
      %v1073 = vlaneseq
      %v1074 = vshrl.u32 %v1073, 7
      %v1075 = vadd.s32 %v1074, 8
      %vm1076 = vcmp.le.f32.partialorder %v1055, %v1065
      %vm1077 = vcmp.le.f32.partialorder %v1056, %v1072
      %vm1078 = vcmp.le.f32.partialorder %v1057, %v1065
      %vm1079 = vcmp.le.f32.partialorder %v1058, %v1072
      %v1080 = vsel %vm1076, %v1074, 16
      %v1081 = vsel %vm1077, %v1074, 16
      %v1082 = vsel %vm1078, %v1075, 16
      %v1083 = vsel %vm1079, %v1075, 16
      %vm1084 = vcmp.lt.s32.totalorder %v1080, %v1082
      %v1085 = vsel %vm1084, %v1080, %v1082
      %v1086 = vrot.slane %v1085, 4
      %vm1087 = vcmp.lt.s32.totalorder %v1085, %v1086
      %v1088 = vsel %vm1087, %v1085, %v1086
      %v1089 = vrot.slane %v1088, 2
      %vm1090 = vcmp.lt.s32.totalorder %v1088, %v1089
      %v1091 = vsel %vm1090, %v1088, %v1089
      %v1092 = vrot.slane %v1091, 1
      %vm1093 = vcmp.lt.s32.totalorder %v1091, %v1092
      %v1094 = vsel %vm1093, %v1091, %v1092
      %vm1095 = vcmp.lt.s32.totalorder %v1081, %v1083
      %v1096 = vsel %vm1095, %v1081, %v1083
      %v1097 = vrot.slane %v1096, 4
      %vm1098 = vcmp.lt.s32.totalorder %v1096, %v1097
      %v1099 = vsel %vm1098, %v1096, %v1097
      %v1100 = vrot.slane %v1099, 2
      %vm1101 = vcmp.lt.s32.totalorder %v1099, %v1100
      %v1102 = vsel %vm1101, %v1099, %v1100
      %v1103 = vrot.slane %v1102, 1
      %vm1104 = vcmp.lt.s32.totalorder %v1102, %v1103
      %v1105 = vsel %vm1104, %v1102, %v1103
      %vm1106 = vcmp.eq.s32.totalorder %v1074, %v1094
      %vm1107 = vcmp.eq.s32.totalorder %v1074, %v1105
      %vm1108 = vcmp.eq.s32.totalorder %v1075, %v1094
      %vm1109 = vcmp.eq.s32.totalorder %v1075, %v1105
      %v1110 = vsel %vm1106, 1, 0
      %v1111 = vsel %vm1107, 1, 0
      %v1112 = vsel %vm1108, 1, 0
      %v1113 = vsel %vm1109, 1, 0
      %v1114 = vcvt.s32.f32 %v1110
      %v1115 = vcvt.s32.f32 %v1111
      %v1116 = vcvt.s32.f32 %v1112
      %v1117 = vcvt.s32.f32 %v1113
      %v1118 = vld [vmem:[%s650] sm:$0xff]
      %v1119 = vld [vmem:[%s650 + $0x8] sm:$0xff]
      %v1120 = vld [vmem:[%s650 + $0x10] sm:$0xff]
      %v1121 = vld [vmem:[%s650 + $0x18] sm:$0xff]
      %v1122 = vld [vmem:[%s11] sm:$0xff]
      %v1123 = vld [vmem:[%s11 + $0x8] sm:$0xff]
      %v1124 = vld [vmem:[%s11 + $0x10] sm:$0xff]
      %v1125 = vld [vmem:[%s11 + $0x18] sm:$0xff]
      %1127 = vset.pattern.permute.xlu0 0
      %1128 = vperm.xlu0 %1127, %v1122
      %v1129 = vpop.permute.xlu0 %1128
      %1132 = vset.pattern.permute.xlu0 0
      %1133 = vperm.xlu0 %1132, %v1123
      %v1134 = vpop.permute.xlu0 %1133
      %1137 = vset.pattern.permute.xlu0 0
      %1138 = vperm.xlu0 %1137, %v1124
      %v1139 = vpop.permute.xlu0 %1138
      %1142 = vset.pattern.permute.xlu0 0
      %1143 = vperm.xlu0 %1142, %v1125
      %v1144 = vpop.permute.xlu0 %1143
      %vm1146 = vcmask 130048
      %v1148 = vsel %vm1146, %v1118, 0
      %v1151 = vsel %vm1146, %v1119, 0
      %v1154 = vsel %vm1146, %v1120, 0
      %v1157 = vsel %vm1146, %v1121, 0
      %1159 = vmatprep.subr.mxu0 %v1115
      %1160 = vmatpush1.msra.mxu0 %v1114
      %1161 = vmatprep.subr.mxu0 %v1117
      %1162 = vmatpush1.msra.mxu0 %v1116
      %1163 = vmatprep.subr.mxu0 0.0
      %1164 = vmatpush1.msra.mxu0 0.0
      %1165 = vmatprep.subr.mxu0 0.0
      %1166 = vmatpush1.msra.mxu0 0.0
      %1167 = vmatprep.subr.mxu0 0.0
      %1168 = vmatpush1.msra.mxu0 0.0
      %1169 = vmatprep.subr.mxu0 0.0
      %1170 = vmatpush1.msra.mxu0 0.0
      %1171 = vmatprep.subr.mxu0 0.0
      %1172 = vmatpush1.msra.mxu0 0.0
      %1173 = vmatprep.subr.mxu0 0.0
      %1174 = vmatpush1.msra.mxu0 0.0
      %1175 = vmatprep.subr.mxu0 0.0
      %1176 = vmatpush1.msra.mxu0 0.0
      %1177 = vmatprep.subr.mxu0 0.0
      %1178 = vmatpush1.msra.mxu0 0.0
      %1179 = vmatprep.subr.mxu0 0.0
      %1180 = vmatpush1.msra.mxu0 0.0
      %1181 = vmatprep.subr.mxu0 0.0
      %1182 = vmatpush1.msra.mxu0 0.0
      %1183 = vmatprep.subr.mxu0 0.0
      %1184 = vmatpush1.msra.mxu0 0.0
      %1185 = vmatprep.subr.mxu0 0.0
      %1186 = vmatpush1.msra.mxu0 0.0
      %1187 = vmatprep.subr.mxu0 0.0
      %1188 = vmatpush1.msra.mxu0 0.0
      %1189 = vmatprep.subr.mxu0 0.0
      %1190 = vmatpush1.msra.mxu0 0.0
      %1191 = vmatprep.subr.mxu0 0.0
      %1192 = vmatpush1.msra.mxu0 0.0
      %1193 = vmatprep.subr.mxu0 0.0
      %1194 = vmatpush1.msra.mxu0 0.0
      %1195 = vmatprep.subr.mxu0 0.0
      %1196 = vmatpush1.msra.mxu0 0.0
      %1197 = vmatprep.subr.mxu0 0.0
      %1198 = vmatpush1.msra.mxu0 0.0
      %1199 = vmatprep.subr.mxu0 0.0
      %1200 = vmatpush1.msra.mxu0 0.0
      %1201 = vmatprep.subr.mxu0 0.0
      %1202 = vmatpush1.msra.mxu0 0.0
      %1203 = vmatprep.subr.mxu0 0.0
      %1204 = vmatpush1.msra.mxu0 0.0
      %1205 = vmatprep.subr.mxu0 0.0
      %1206 = vmatpush1.msra.mxu0 0.0
      %1207 = vmatprep.subr.mxu0 0.0
      %1208 = vmatpush1.msra.mxu0 0.0
      %1209 = vmatprep.subr.mxu0 0.0
      %1210 = vmatpush1.msra.mxu0 0.0
      %1211 = vmatprep.subr.mxu0 0.0
      %1212 = vmatpush1.msra.mxu0 0.0
      %1213 = vmatprep.subr.mxu0 0.0
      %1214 = vmatpush1.msra.mxu0 0.0
      %1215 = vmatprep.subr.mxu0 0.0
      %1216 = vmatpush1.msra.mxu0 0.0
      %1217 = vmatprep.subr.mxu0 0.0
      %1218 = vmatpush1.msra.mxu0 0.0
      %1219 = vmatprep.subr.mxu0 0.0
      %1220 = vmatpush1.msra.mxu0 0.0
      %1221 = vmatprep.subr.mxu0 0.0
      %1222 = vmatpush1.msra.mxu0 0.0
      %1223 = vmatprep.mubr.f32.mxu0 0.0
      %1224 = vmatmul.mubr.f32.gmra.mrb[0].mxu0 %v1148
      %v1225 = vpop.f32.mrb[0].mxu0
      %v1226 = vadd.f32 %v1129, %v1225
      %v1227 = vpop.f32.mrb[0].mxu0
      %v1228 = vadd.f32 %v1129, %v1227
      %1229 = vmatprep.mubr.f32.mxu0 0.0
      %1230 = vmatmul.mubr.f32.gmra.mrb[0].mxu0 %v1151
      %v1231 = vpop.f32.mrb[0].mxu0
      %v1232 = vadd.f32 %v1134, %v1231
      %v1233 = vpop.f32.mrb[0].mxu0
      %v1234 = vadd.f32 %v1134, %v1233
      %1235 = vmatprep.mubr.f32.mxu0 0.0
      %1236 = vmatmul.mubr.f32.gmra.mrb[0].mxu0 %v1154
      %v1237 = vpop.f32.mrb[0].mxu0
      %v1238 = vadd.f32 %v1139, %v1237
      %v1239 = vpop.f32.mrb[0].mxu0
      %v1240 = vadd.f32 %v1139, %v1239
      %1241 = vmatprep.mubr.f32.mxu0 0.0
      %1242 = vmatmul.mubr.f32.gmra.mrb[0].mxu0 %v1157
      %v1243 = vpop.f32.mrb[0].mxu0
      %v1244 = vadd.f32 %v1144, %v1243
      %v1245 = vpop.f32.mrb[0].mxu0
      %v1246 = vadd.f32 %v1144, %v1245
      %1247 = vdwg.mxu0
      %v1248 = vmax.f32 %v1226, 0.0
      %v1249 = vmax.f32 %v1228, 0.0
      %v1250 = vmax.f32 %v1232, 0.0
      %v1251 = vmax.f32 %v1234, 0.0
      %v1252 = vmax.f32 %v1238, 0.0
      %v1253 = vmax.f32 %v1240, 0.0
      %v1254 = vmax.f32 %v1244, 0.0
      %v1255 = vmax.f32 %v1246, 0.0
      %v1256 = vld [vmem:[%s12] sm:$0xff]
      %v1257 = vld [vmem:[%s12 + $0x8] sm:$0xff]
      %v1258 = vld [vmem:[%s12 + $0x10] sm:$0xff]
      %v1259 = vld [vmem:[%s12 + $0x18] sm:$0xff]
      %v1260 = vld [vmem:[%s13] sm:$0xff]
      %v1261 = vld [vmem:[%s13 + $0x8] sm:$0xff]
      %v1262 = vld [vmem:[%s13 + $0x10] sm:$0xff]
      %v1263 = vld [vmem:[%s13 + $0x18] sm:$0xff]
      %1265 = vset.pattern.permute.xlu0 0
      %1266 = vperm.xlu0 %1265, %v1260
      %v1267 = vpop.permute.xlu0 %1266
      %1270 = vset.pattern.permute.xlu0 0
      %1271 = vperm.xlu0 %1270, %v1261
      %v1272 = vpop.permute.xlu0 %1271
      %1275 = vset.pattern.permute.xlu0 0
      %1276 = vperm.xlu0 %1275, %v1262
      %v1277 = vpop.permute.xlu0 %1276
      %1280 = vset.pattern.permute.xlu0 0
      %1281 = vperm.xlu0 %1280, %v1263
      %v1282 = vpop.permute.xlu0 %1281
      %v1285 = vsel %vm707, %v1256, 0
      %v1288 = vsel %vm707, %v1257, 0
      %v1291 = vsel %vm707, %v1258, 0
      %v1294 = vsel %vm707, %v1259, 0
      %1296 = vmatprep.subr.mxu0 %v1249
      %1297 = vmatpush1.msra.mxu0 %v1248
      %1298 = vmatprep.subr.mxu0 %v1251
      %1299 = vmatpush1.msra.mxu0 %v1250
      %1300 = vmatprep.subr.mxu0 %v1253
      %1301 = vmatpush1.msra.mxu0 %v1252
      %1302 = vmatprep.subr.mxu0 %v1255
      %1303 = vmatpush1.msra.mxu0 %v1254
      %1304 = vmatprep.subr.mxu0 0.0
      %1305 = vmatpush1.msra.mxu0 0.0
      %1306 = vmatprep.subr.mxu0 0.0
      %1307 = vmatpush1.msra.mxu0 0.0
      %1308 = vmatprep.subr.mxu0 0.0
      %1309 = vmatpush1.msra.mxu0 0.0
      %1310 = vmatprep.subr.mxu0 0.0
      %1311 = vmatpush1.msra.mxu0 0.0
      %1312 = vmatprep.subr.mxu0 0.0
      %1313 = vmatpush1.msra.mxu0 0.0
      %1314 = vmatprep.subr.mxu0 0.0
      %1315 = vmatpush1.msra.mxu0 0.0
      %1316 = vmatprep.subr.mxu0 0.0
      %1317 = vmatpush1.msra.mxu0 0.0
      %1318 = vmatprep.subr.mxu0 0.0
      %1319 = vmatpush1.msra.mxu0 0.0
      %1320 = vmatprep.subr.mxu0 0.0
      %1321 = vmatpush1.msra.mxu0 0.0
      %1322 = vmatprep.subr.mxu0 0.0
      %1323 = vmatpush1.msra.mxu0 0.0
      %1324 = vmatprep.subr.mxu0 0.0
      %1325 = vmatpush1.msra.mxu0 0.0
      %1326 = vmatprep.subr.mxu0 0.0
      %1327 = vmatpush1.msra.mxu0 0.0
      %1328 = vmatprep.subr.mxu0 0.0
      %1329 = vmatpush1.msra.mxu0 0.0
      %1330 = vmatprep.subr.mxu0 0.0
      %1331 = vmatpush1.msra.mxu0 0.0
      %1332 = vmatprep.subr.mxu0 0.0
      %1333 = vmatpush1.msra.mxu0 0.0
      %1334 = vmatprep.subr.mxu0 0.0
      %1335 = vmatpush1.msra.mxu0 0.0
      %1336 = vmatprep.subr.mxu0 0.0
      %1337 = vmatpush1.msra.mxu0 0.0
      %1338 = vmatprep.subr.mxu0 0.0
      %1339 = vmatpush1.msra.mxu0 0.0
      %1340 = vmatprep.subr.mxu0 0.0
      %1341 = vmatpush1.msra.mxu0 0.0
      %1342 = vmatprep.subr.mxu0 0.0
      %1343 = vmatpush1.msra.mxu0 0.0
      %1344 = vmatprep.subr.mxu0 0.0
      %1345 = vmatpush1.msra.mxu0 0.0
      %1346 = vmatprep.subr.mxu0 0.0
      %1347 = vmatpush1.msra.mxu0 0.0
      %1348 = vmatprep.subr.mxu0 0.0
      %1349 = vmatpush1.msra.mxu0 0.0
      %1350 = vmatprep.subr.mxu0 0.0
      %1351 = vmatpush1.msra.mxu0 0.0
      %1352 = vmatprep.subr.mxu0 0.0
      %1353 = vmatpush1.msra.mxu0 0.0
      %1354 = vmatprep.subr.mxu0 0.0
      %1355 = vmatpush1.msra.mxu0 0.0
      %1356 = vmatprep.subr.mxu0 0.0
      %1357 = vmatpush1.msra.mxu0 0.0
      %1358 = vmatprep.subr.mxu0 0.0
      %1359 = vmatpush1.msra.mxu0 0.0
      %1360 = vmatprep.mubr.f32.mxu0 0.0
      %1361 = vmatmul.mubr.f32.gmra.mrb[0].mxu0 %v1285
      %v1362 = vpop.f32.mrb[0].mxu0
      %v1363 = vadd.f32 %v1267, %v1362
      %v1364 = vpop.f32.mrb[0].mxu0
      %v1365 = vadd.f32 %v1267, %v1364
      %1366 = vmatprep.mubr.f32.mxu0 0.0
      %1367 = vmatmul.mubr.f32.gmra.mrb[0].mxu0 %v1288
      %v1368 = vpop.f32.mrb[0].mxu0
      %v1369 = vadd.f32 %v1272, %v1368
      %v1370 = vpop.f32.mrb[0].mxu0
      %v1371 = vadd.f32 %v1272, %v1370
      %1372 = vmatprep.mubr.f32.mxu0 0.0
      %1373 = vmatmul.mubr.f32.gmra.mrb[0].mxu0 %v1291
      %v1374 = vpop.f32.mrb[0].mxu0
      %v1375 = vadd.f32 %v1277, %v1374
      %v1376 = vpop.f32.mrb[0].mxu0
      %v1377 = vadd.f32 %v1277, %v1376
      %1378 = vmatprep.mubr.f32.mxu0 0.0
      %1379 = vmatmul.mubr.f32.gmra.mrb[0].mxu0 %v1294
      %v1380 = vpop.f32.mrb[0].mxu0
      %v1381 = vadd.f32 %v1282, %v1380
      %v1382 = vpop.f32.mrb[0].mxu0
      %v1383 = vadd.f32 %v1282, %v1382
      %1384 = vdwg.mxu0
      %v1385 = vadd.f32 %v1363, %v1369
      %v1386 = vadd.f32 %v1385, %v1375
      %v1387 = vadd.f32 %v1386, %v1381
      %v1388 = vrot.slane %v1387, 4
      %v1389 = vadd.f32 %v1387, %v1388
      %v1390 = vrot.slane %v1389, 2
      %v1391 = vadd.f32 %v1389, %v1390
      %v1392 = vrot.slane %v1391, 1
      %v1393 = vadd.f32 %v1391, %v1392
      %v1394 = vadd.f32 %v1365, %v1371
      %v1395 = vadd.f32 %v1394, %v1377
      %v1396 = vadd.f32 %v1395, %v1383
      %v1397 = vrot.slane %v1396, 4
      %v1398 = vadd.f32 %v1396, %v1397
      %v1399 = vrot.slane %v1398, 2
      %v1400 = vadd.f32 %v1398, %v1399
      %v1401 = vrot.slane %v1400, 1
      %v1402 = vadd.f32 %v1400, %v1401
      %v1403 = vrcp.pop 32.0
      %v1404 = vmul.f32 %v1393, %v1403
      %v1405 = vmul.f32 %v1402, %v1403
      %v1406 = vsub.f32 %v1363, %v1404
      %v1407 = vsub.f32 %v1365, %v1405
      %v1408 = vsub.f32 %v1369, %v1404
      %v1409 = vsub.f32 %v1371, %v1405
      %v1410 = vsub.f32 %v1375, %v1404
      %v1411 = vsub.f32 %v1377, %v1405
      %v1412 = vsub.f32 %v1381, %v1404
      %v1413 = vsub.f32 %v1383, %v1405
      %v1414 = vmul.f32 %v1406, %v1406
      %v1415 = vmul.f32 %v1407, %v1407
      %v1416 = vmul.f32 %v1408, %v1408
      %v1417 = vmul.f32 %v1409, %v1409
      %v1418 = vmul.f32 %v1410, %v1410
      %v1419 = vmul.f32 %v1411, %v1411
      %v1420 = vmul.f32 %v1412, %v1412
      %v1421 = vmul.f32 %v1413, %v1413
      %v1422 = vadd.f32 %v1414, %v1416
      %v1423 = vadd.f32 %v1422, %v1418
      %v1424 = vadd.f32 %v1423, %v1420
      %v1425 = vrot.slane %v1424, 4
      %v1426 = vadd.f32 %v1424, %v1425
      %v1427 = vrot.slane %v1426, 2
      %v1428 = vadd.f32 %v1426, %v1427
      %v1429 = vrot.slane %v1428, 1
      %v1430 = vadd.f32 %v1428, %v1429
      %v1431 = vadd.f32 %v1415, %v1417
      %v1432 = vadd.f32 %v1431, %v1419
      %v1433 = vadd.f32 %v1432, %v1421
      %v1434 = vrot.slane %v1433, 4
      %v1435 = vadd.f32 %v1433, %v1434
      %v1436 = vrot.slane %v1435, 2
      %v1437 = vadd.f32 %v1435, %v1436
      %v1438 = vrot.slane %v1437, 1
      %v1439 = vadd.f32 %v1437, %v1438
      %v1440 = vmul.f32 %v1430, %v1403
      %v1441 = vmul.f32 %v1439, %v1403
      %v1442 = vadd.f32 %v1440, 1e-05
      %v1443 = vadd.f32 %v1441, 1e-05
      %v1444 = vrsqrt.pop %v1442
      %v1445 = vrsqrt.pop %v1443
      %v1446 = vmul.f32 %v1406, %v1444
      %v1447 = vmul.f32 %v1407, %v1445
      %v1448 = vmul.f32 %v1408, %v1444
      %v1449 = vmul.f32 %v1409, %v1445
      %v1450 = vmul.f32 %v1410, %v1444
      %v1451 = vmul.f32 %v1411, %v1445
      %v1452 = vmul.f32 %v1412, %v1444
      %v1453 = vmul.f32 %v1413, %v1445
      %v1454 = vld [vmem:[%s14] sm:$0xff]
      %v1455 = vld [vmem:[%s14 + $0x8] sm:$0xff]
      %v1456 = vld [vmem:[%s14 + $0x10] sm:$0xff]
      %v1457 = vld [vmem:[%s14 + $0x18] sm:$0xff]
      %1459 = vset.pattern.permute.xlu0 0
      %1460 = vperm.xlu0 %1459, %v1454
      %v1461 = vpop.permute.xlu0 %1460
      %1464 = vset.pattern.permute.xlu0 0
      %1465 = vperm.xlu0 %1464, %v1455
      %v1466 = vpop.permute.xlu0 %1465
      %1469 = vset.pattern.permute.xlu0 0
      %1470 = vperm.xlu0 %1469, %v1456
      %v1471 = vpop.permute.xlu0 %1470
      %1474 = vset.pattern.permute.xlu0 0
      %1475 = vperm.xlu0 %1474, %v1457
      %v1476 = vpop.permute.xlu0 %1475
      %v1478 = vmul.f32 %v1446, %v1461
      %v1479 = vmul.f32 %v1447, %v1461
      %v1480 = vmul.f32 %v1448, %v1466
      %v1481 = vmul.f32 %v1449, %v1466
      %v1482 = vmul.f32 %v1450, %v1471
      %v1483 = vmul.f32 %v1451, %v1471
      %v1484 = vmul.f32 %v1452, %v1476
      %v1485 = vmul.f32 %v1453, %v1476
      %v1486 = vld [vmem:[%s15] sm:$0xff]
      %v1487 = vld [vmem:[%s15 + $0x8] sm:$0xff]
      %v1488 = vld [vmem:[%s15 + $0x10] sm:$0xff]
      %v1489 = vld [vmem:[%s15 + $0x18] sm:$0xff]
      %1491 = vset.pattern.permute.xlu0 0
      %1492 = vperm.xlu0 %1491, %v1486
      %v1493 = vpop.permute.xlu0 %1492
      %1496 = vset.pattern.permute.xlu0 0
      %1497 = vperm.xlu0 %1496, %v1487
      %v1498 = vpop.permute.xlu0 %1497
      %1501 = vset.pattern.permute.xlu0 0
      %1502 = vperm.xlu0 %1501, %v1488
      %v1503 = vpop.permute.xlu0 %1502
      %1506 = vset.pattern.permute.xlu0 0
      %1507 = vperm.xlu0 %1506, %v1489
      %v1508 = vpop.permute.xlu0 %1507
      %v1510 = vadd.f32 %v1478, %v1493
      %v1511 = vadd.f32 %v1479, %v1493
      %v1512 = vadd.f32 %v1480, %v1498
      %v1513 = vadd.f32 %v1481, %v1498
      %v1514 = vadd.f32 %v1482, %v1503
      %v1515 = vadd.f32 %v1483, %v1503
      %v1516 = vadd.f32 %v1484, %v1508
      %v1517 = vadd.f32 %v1485, %v1508
      %1518 = vst [vmem:[%s660] sm:$0xff] %v1510
      %1519 = vst [vmem:[%s660 + $0x8] sm:$0xff] %v1511
      %1520 = vst [vmem:[%s660 + $0x10] sm:$0xff] %v1512
      %1521 = vst [vmem:[%s660 + $0x18] sm:$0xff] %v1513
      %1522 = vst [vmem:[%s660 + $0x20] sm:$0xff] %v1514
      %1523 = vst [vmem:[%s660 + $0x28] sm:$0xff] %v1515
      %1524 = vst [vmem:[%s660 + $0x30] sm:$0xff] %v1516
      %1525 = vst [vmem:[%s660 + $0x38] sm:$0xff] %v1517
      %v1526 = vcombine.low %v1094, %v1105
      %v1528 = vunpack.c.l.s4 1966171168
      %v1529 = vunpack.c.0.s8 %v1528
      %v1530 = vlaneseq
      %v1531 = vshrl.u32 %v1530, 7
      %v1532 = vsub.s32 %v1529, %v1531
      %v1533 = vrot.slane %v1526, %v1532
      %v1535 = vunpack.c.l.s4 1966171168
      %v1536 = vunpack.c.0.s8 %v1535
      %v1537 = vlaneseq
      %v1538 = vshrl.u32 %v1537, 7
      %v1539 = vsub.s32 %v1536, %v1538
      %v1540 = vrot.slane %v1533, %v1539
      %v1541 = vlaneseq
      %vm1542 = vcmp.ge.s32.totalorder %v1541, 0
      %vm1543 = vcmp.lt.s32.totalorder %v1541, 256
      %vm1544 = vmand %vm1542, %vm1543
      %1545 = vst.msk [vmem:[%s669] sm:$0x3] %vm1544, %v1540
      %s1546 = smul.u32 2, %s40
      %p1547 = scmp.lt.s32.totalorder %s39, 1
      %s1548 = scalar_select %p1547, %s39, 1
      %p1549 = scmp.lt.s32.totalorder %s1546, 1
      %s1550 = scalar_select %p1549, %s1546, 1
      %s1551 = smul.addr %s1548, 8
      %s1552 = sadd.s32 %s1550, %s1551
      %s1553 = smul.addr %s1552, 8
      %s1554 = scalar_lea.vmem %s16, %s1553
      %s1555 = smul.u32 2, %s40
      %p1556 = scmp.lt.s32.totalorder %s39, 1
      %s1557 = scalar_select %p1556, %s39, 1
      %p1558 = scmp.lt.s32.totalorder %s1555, 1
      %s1559 = scalar_select %p1558, %s1555, 1
      %s1560 = smul.addr %s1557, 2
      %s1561 = sadd.s32 %s1559, %s1560
      %s1562 = scalar_lea.vmem %s17, %s1561
      // Predicated region
      $region81: #{vector_quantizer_forward.1} parent=79 // pred_check
        %p1563 = pneg %p410
      $region82: #{vector_quantizer_forward.1} parent=79 // pred_check_branch
        %1565 = sbr.rel (%p1563) target = $region84
      $region83: #{vector_quantizer_forward.1} parent=79 // pred_region
        %s1566 = smul.u32 2, %s40
      $region84: #{vector_quantizer_forward.1} parent=79 // pred_fallthru
        _
      // Predicated region
      $region85: #{vector_quantizer_forward.1} parent=79 // pred_check
        %p1567 = pneg %p438
      $region86: #{vector_quantizer_forward.1} parent=79 // pred_check_branch
        %1569 = sbr.rel (%p1567) target = $region88
      $region87: #{vector_quantizer_forward.1} parent=79 // pred_region
        %s1570 = smul.u32 2, %s40
      $region88: #{vector_quantizer_forward.1} parent=79 // pred_fallthru
        _
    $region80: #{vector_quantizer_forward.1} parent=5 // pred_fallthru
      _
    %p1571 = scmp.le.s32.totalorder 2, %s30
    // Predicated region
    $region89: #{vector_quantizer_forward.1} parent=5 // pred_check
      %p1572 = pneg %p1571
    $region90: #{vector_quantizer_forward.1} parent=5 // pred_check_branch
      %1574 = sbr.rel (%p1572) target = $region92
    $region91: #{vector_quantizer_forward.1} parent=5 // pred_region
      %s1575 = ssub.s32 %s30, 2
      // Predicated region
      $region93: #{vector_quantizer_forward.1} parent=91 // pred_check
        %p1576 = pneg %p416
      $region94: #{vector_quantizer_forward.1} parent=91 // pred_check_branch
        %1578 = sbr.rel (%p1576) target = $region96
      $region95: #{vector_quantizer_forward.1} parent=91 // pred_region
        %s1579 = smul.u32 2, %s42
        %p1580 = scmp.lt.s32.totalorder %s41, 1
        %s1581 = scalar_select %p1580, %s41, 1
        %p1582 = scmp.lt.s32.totalorder %s1579, 1
        %s1583 = scalar_select %p1582, %s1579, 1
        %s1584 = smul.addr %s1581, 8
        %s1585 = sadd.s32 %s1583, %s1584
        %s1586 = smul.addr %s1585, 8
        %s1587 = scalar_lea.vmem %s16, %s1586
      $region96: #{vector_quantizer_forward.1} parent=91 // pred_fallthru
        _
      // Predicated region
      $region97: #{vector_quantizer_forward.1} parent=91 // pred_check
        %p1588 = pneg %p444
      $region98: #{vector_quantizer_forward.1} parent=91 // pred_check_branch
        %1590 = sbr.rel (%p1588) target = $region100
      $region99: #{vector_quantizer_forward.1} parent=91 // pred_region
        %s1591 = smul.u32 2, %s42
        %p1592 = scmp.lt.s32.totalorder %s41, 1
        %s1593 = scalar_select %p1592, %s41, 1
        %p1594 = scmp.lt.s32.totalorder %s1591, 1
        %s1595 = scalar_select %p1594, %s1591, 1
        %s1596 = smul.addr %s1593, 2
        %s1597 = sadd.s32 %s1595, %s1596
        %s1598 = scalar_lea.vmem %s17, %s1597
      $region100: #{vector_quantizer_forward.1} parent=91 // pred_fallthru
        _
    $region92: #{vector_quantizer_forward.1} parent=5 // pred_fallthru
      _
  $region6: #{vector_quantizer_forward.1} parent=0 // loop_footer
    %s34 = sadd.s32 1, %s30
  $region7: #{vector_quantizer_forward.1} parent=0 // loop_footer_branch
    %29 = sbr.rel target = $region3
  $region8: #{vector_quantizer_forward.1} parent=0 // loop_exit
    _

</llo_original>
